<compile_context>
chip_gen: v7x
topology: tpu7x:2x2x1
jax: 0.10.0
libtpu: 0.0.40
codegen_flags: <defaults>
</compile_context>

<pallas_src>
import functools

import jax
import jax.numpy as jnp
from jax import lax
from jax.experimental import pallas as pl
from jax.experimental.pallas import tpu as pltpu


def _leaky_relu(x, negative_slope=0.2):
    # max(x, a*x) == leaky_relu(x) for 0 < a < 1; 2 VALU ops per vreg.
    return jnp.maximum(x, negative_slope * x)


def _round_up(n, m):
    return ((n + m - 1) // m) * m


def latent_d_kernel(x_ref, w1_ref, b1_ref, w2_ref, b2_ref, w3_ref, b3_ref, o_ref):
    # x_ref : (bb, z1_dim) f32   -- batch tile straight from HBM
    # w1_ref: (l0, z1_dim) bf16,  b1_ref: (l0, 1) f32
    # w2_ref: (l1, l0)     bf16,  b2_ref: (l1, 1) f32
    # w3_ref: (l1, 1)      f32,   b3_ref: (1, 1)  f32
    # o_ref : (1, bb)      f32   -- lane-dense output row (batch on lanes)
    x_bf = x_ref[...].astype(jnp.bfloat16)

    # Layer 1: NT matmul, contract the feature axis of both operands.
    # Result (l0, bb): features on sublanes, batch on lanes.
    h1 = lax.dot_general(
        w1_ref[...], x_bf,
        dimension_numbers=(((1,), (1,)), ((), ())),
        preferred_element_type=jnp.float32) + b1_ref[...]
    h1 = _leaky_relu(h1.astype(jnp.bfloat16))            # (l0, bb) bf16

    # Layer 2: (l1, l0) @ (l0, bb) -> (l1, bb), f32 accumulate.
    h2 = jnp.dot(w2_ref[...], h1,
                 preferred_element_type=jnp.float32) + b2_ref[...]
    h2 = _leaky_relu(h2)                                  # (l1, bb) f32

    # Layer 3 (256 -> 1): VPU broadcast-multiply + XLU sublane reduction; keeps
    # the MXU free and the output lane-dense.
    o = jnp.sum(h2 * w3_ref[...], axis=0, keepdims=True) + b3_ref[...]
    o_ref[...] = o.astype(o_ref.dtype)


@functools.partial(jax.jit, static_argnames=("block_b",))
def latent_d_forward(x, params, block_b=2048):
    """Forward pass of latent_D.

    x:       (B, z1_dim) float32
    params:  dict with PyTorch-convention weights:
             w1 (l0, z1_dim), b1 (l0,), w2 (l1, l0), b2 (l1,), w3 (1, l1), b3 (1,)
    returns: (B, 1) float32
    """
    B, z1_dim = x.shape
    l0 = params["w1"].shape[0]
    l1 = params["w2"].shape[0]

    # Batch tile: 256-aligned (v6e/v7x MXU width, also a multiple of v5e's 128
    # and of the 8-sublane constraint). Cap at ceil(B/2) so the grid has >=2
    # "parallel" steps for v7x's two TensorCores when B is large enough.
    bb = min(block_b, max(256, _round_up(-(-B // 2), 256)))
    grid = (pl.cdiv(B, bb),)

    # Only the (tiny) weights are re-laid out / cast in the wrapper; x goes to
    # the kernel untouched (no transpose / cast / pad HBM passes).
    w1 = params["w1"].astype(jnp.bfloat16)                 # (l0, z1_dim)
    w2 = params["w2"].astype(jnp.bfloat16)                 # (l1, l0)
    b1 = params["b1"].astype(jnp.float32)[:, None]         # (l0, 1)
    b2 = params["b2"].astype(jnp.float32)[:, None]         # (l1, 1)
    w3 = params["w3"].astype(jnp.float32).reshape(l1, 1)   # (l1, 1)
    b3 = params["b3"].astype(jnp.float32).reshape(1, 1)    # (1, 1)

    outT = pl.pallas_call(
        latent_d_kernel,
        out_shape=jax.ShapeDtypeStruct((1, B), jnp.float32),
        grid_spec=pltpu.PrefetchScalarGridSpec(
            num_scalar_prefetch=0,
            grid=grid,
            in_specs=[
                pl.BlockSpec((bb, z1_dim), lambda i: (i, 0)),  # x batch tile (f32)
                pl.BlockSpec((l0, z1_dim), lambda i: (0, 0)),  # W1 (full)
                pl.BlockSpec((l0, 1), lambda i: (0, 0)),       # b1
                pl.BlockSpec((l1, l0), lambda i: (0, 0)),      # W2 (full)
                pl.BlockSpec((l1, 1), lambda i: (0, 0)),       # b2
                pl.BlockSpec((l1, 1), lambda i: (0, 0)),       # W3 (as column)
                pl.BlockSpec((1, 1), lambda i: (0, 0)),        # b3
            ],
            out_specs=pl.BlockSpec((1, bb), lambda i: (0, i)),
        ),
        compiler_params=pltpu.CompilerParams(
            dimension_semantics=("parallel",),
        ),
    )(x.astype(jnp.float32), w1, b1, w2, b2, w3, b3)

    # (1, B) -> (B, 1) is a pure reshape (same element order), no transpose.
    return outT.reshape(B, 1).astype(x.dtype)


def init_latent_d_params(key, z1_dim, layers=(512, 256)):
    """Deterministic synthetic parameter init (PyTorch Linear shape conventions)."""
    dims = [z1_dim] + list(layers) + [1]
    params = {}
    for idx in range(len(dims) - 1):
        fan_in, fan_out = dims[idx], dims[idx + 1]
        key, kw, kb = jax.random.split(key, 3)
        bound = 1.0 / jnp.sqrt(fan_in)
        params[f"w{idx + 1}"] = jax.random.uniform(
            kw, (fan_out, fan_in), jnp.float32, -bound, bound)
        params[f"b{idx + 1}"] = jax.random.uniform(
            kb, (fan_out,), jnp.float32, -bound, bound)
    return params


def latent_d_reference(x, params):
    """Pure-JAX reference matching PyTorch semantics (f32 everywhere)."""
    h = x @ params["w1"].T + params["b1"]
    h = jnp.where(h >= 0, h, 0.2 * h)
    h = h @ params["w2"].T + params["b2"]
    h = jnp.where(h >= 0, h, 0.2 * h)
    return h @ params["w3"].T + params["b3"]


if __name__ == "__main__":
    key = jax.random.PRNGKey(0)
    z1_dim = 32
    layers = (512, 256)

    key, kp = jax.random.split(key)
    params = init_latent_d_params(kp, z1_dim, layers)

    # Small sanity batch: single grid step with a partially-filled tile.
    key, kx = jax.random.split(key)
    x_small = jax.random.normal(kx, (8, z1_dim), jnp.float32)
    out_small = jax.block_until_ready(latent_d_forward(x_small, params))
    ref_small = latent_d_reference(x_small, params)
    assert out_small.shape == (8, 1), out_small.shape
    assert jnp.allclose(out_small, ref_small, atol=5e-2, rtol=5e-2), (
        float(jnp.max(jnp.abs(out_small - ref_small))))

    # Batch that is not a multiple of the tile: exercises multi-step grid
    # (>=2 steps for megacore) + masked tail tile (no explicit padding).
    key, kx2 = jax.random.split(key)
    x_big = jax.random.normal(kx2, (300, z1_dim), jnp.float32)
    out_big = jax.block_until_ready(latent_d_forward(x_big, params))
    ref_big = latent_d_reference(x_big, params)
    assert out_big.shape == (300, 1), out_big.shape
    assert jnp.allclose(out_big, ref_big, atol=5e-2, rtol=5e-2), (
        float(jnp.max(jnp.abs(out_big - ref_big))))

    print("KERNEL_OK")
</pallas_src>

<mosaic_0001>
module attributes {stable_mosaic.version = 11 : i64} {
  func.func @latent_d_kernel(%arg0: i32, %arg1: memref<256x32xf32, #tpu.memory_space<vmem>>, %arg2: memref<512x32xbf16, #tpu.memory_space<vmem>>, %arg3: memref<512x1xf32, #tpu.memory_space<vmem>>, %arg4: memref<256x512xbf16, #tpu.memory_space<vmem>>, %arg5: memref<256x1xf32, #tpu.memory_space<vmem>>, %arg6: memref<256x1xf32, #tpu.memory_space<vmem>>, %arg7: memref<1x1xf32, #tpu.memory_space<vmem>>, %arg8: memref<1x256xf32, #tpu.memory_space<vmem>>) attributes {dimension_semantics = [#tpu.dimension_semantics<parallel>], iteration_bounds = array<i64: 1>, scalar_prefetch = 0 : i64, scratch_operands = 0 : i64, tpu.core_type = #tpu.core_type<tc>, window_params = [{transform_indices = @transform_0, window_bounds = array<i64: 256, 32>}, {pipeline_mode = #tpu.pipeline_mode<synchronous>, transform_indices = @transform_1, window_bounds = array<i64: 512, 32>}, {pipeline_mode = #tpu.pipeline_mode<synchronous>, transform_indices = @transform_2, window_bounds = array<i64: 512, 1>}, {pipeline_mode = #tpu.pipeline_mode<synchronous>, transform_indices = @transform_3, window_bounds = array<i64: 256, 512>}, {pipeline_mode = #tpu.pipeline_mode<synchronous>, transform_indices = @transform_4, window_bounds = array<i64: 256, 1>}, {pipeline_mode = #tpu.pipeline_mode<synchronous>, transform_indices = @transform_5, window_bounds = array<i64: 256, 1>}, {pipeline_mode = #tpu.pipeline_mode<synchronous>, transform_indices = @transform_6, window_bounds = array<i64: 1, 1>}, {transform_indices = @transform_7, window_bounds = array<i64: 1, 256>}]} {
    %c0 = arith.constant 0 : index
    %c0_0 = arith.constant 0 : index
    %0 = vector.load %arg1[%c0, %c0_0] : memref<256x32xf32, #tpu.memory_space<vmem>>, vector<256x32xf32>
    %1 = arith.truncf %0 : vector<256x32xf32> to vector<256x32xbf16>
    %c0_1 = arith.constant 0 : index
    %c0_2 = arith.constant 0 : index
    %2 = vector.load %arg2[%c0_1, %c0_2] : memref<512x32xbf16, #tpu.memory_space<vmem>>, vector<512x32xbf16>
    %cst = arith.constant dense<0.000000e+00> : vector<512x256xf32>
    %3 = tpu.matmul %2, %1, %cst {dimension_numbers = #tpu.dot_dimension_numbers<[1], [1], [0], [0], [0, 0, 1, 0], [], []>} : vector<512x32xbf16>, vector<256x32xbf16>, vector<512x256xf32> -> vector<512x256xf32>
    %c0_3 = arith.constant 0 : index
    %c0_4 = arith.constant 0 : index
    %4 = vector.load %arg3[%c0_3, %c0_4] : memref<512x1xf32, #tpu.memory_space<vmem>>, vector<512x1xf32>
    %5 = vector.broadcast %4 : vector<512x1xf32> to vector<512x256xf32>
    %6 = arith.addf %3, %5 : vector<512x256xf32>
    %7 = arith.truncf %6 : vector<512x256xf32> to vector<512x256xbf16>
    %cst_5 = arith.constant 2.001950e-01 : bf16
    %8 = vector.broadcast %cst_5 : bf16 to vector<512x256xbf16>
    %9 = arith.mulf %8, %7 : vector<512x256xbf16>
    %10 = arith.maximumf %7, %9 : vector<512x256xbf16>
    %c0_6 = arith.constant 0 : index
    %c0_7 = arith.constant 0 : index
    %11 = vector.load %arg4[%c0_6, %c0_7] : memref<256x512xbf16, #tpu.memory_space<vmem>>, vector<256x512xbf16>
    %cst_8 = arith.constant dense<0.000000e+00> : vector<256x256xf32>
    %12 = tpu.matmul %11, %10, %cst_8 {dimension_numbers = #tpu.dot_dimension_numbers<[1], [0], [0], [1], [0, 0, 1, 1], [], []>} : vector<256x512xbf16>, vector<512x256xbf16>, vector<256x256xf32> -> vector<256x256xf32>
    %c0_9 = arith.constant 0 : index
    %c0_10 = arith.constant 0 : index
    %13 = vector.load %arg5[%c0_9, %c0_10] : memref<256x1xf32, #tpu.memory_space<vmem>>, vector<256x1xf32>
    %14 = vector.broadcast %13 : vector<256x1xf32> to vector<256x256xf32>
    %15 = arith.addf %12, %14 : vector<256x256xf32>
    %cst_11 = arith.constant 2.000000e-01 : f32
    %16 = vector.broadcast %cst_11 : f32 to vector<256x256xf32>
    %17 = arith.mulf %16, %15 : vector<256x256xf32>
    %18 = arith.maximumf %15, %17 : vector<256x256xf32>
    %c0_12 = arith.constant 0 : index
    %c0_13 = arith.constant 0 : index
    %19 = vector.load %arg6[%c0_12, %c0_13] : memref<256x1xf32, #tpu.memory_space<vmem>>, vector<256x1xf32>
    %20 = vector.broadcast %19 : vector<256x1xf32> to vector<256x256xf32>
    %21 = arith.mulf %18, %20 : vector<256x256xf32>
    %cst_14 = arith.constant dense<0.000000e+00> : vector<256xf32>
    %22 = vector.multi_reduction <add>, %21, %cst_14 [0] : vector<256x256xf32> to vector<256xf32>
    %23 = vector.shape_cast %22 : vector<256xf32> to vector<1x256xf32>
    %c0_15 = arith.constant 0 : index
    %c0_16 = arith.constant 0 : index
    %24 = vector.load %arg7[%c0_15, %c0_16] : memref<1x1xf32, #tpu.memory_space<vmem>>, vector<1x1xf32>
    %25 = vector.broadcast %24 : vector<1x1xf32> to vector<1x256xf32>
    %26 = arith.addf %23, %25 : vector<1x256xf32>
    %c0_17 = arith.constant 0 : index
    %c0_18 = arith.constant 0 : index
    %27 = vector.load %arg8[%c0_17, %c0_18] : memref<1x256xf32, #tpu.memory_space<vmem>>, vector<1x256xf32>
    tpu.vector_store %arg8[%c0_17, %c0_18], %26 {strides = array<i32>} : memref<1x256xf32, #tpu.memory_space<vmem>>, vector<1x256xf32>,
    return
  }
  func.func @transform_0(%arg0: i32) -> (i32, i32) {
    %c0_i32 = arith.constant 0 : i32
    %c0_i32_0 = arith.constant 0 : i32
    return %arg0, %c0_i32 : i32, i32
  }
  func.func @transform_1(%arg0: i32) -> (i32, i32) {
    %c0_i32 = arith.constant 0 : i32
    %c0_i32_0 = arith.constant 0 : i32
    %c0_i32_1 = arith.constant 0 : i32
    return %c0_i32, %c0_i32_0 : i32, i32
  }
  func.func @transform_2(%arg0: i32) -> (i32, i32) {
    %c0_i32 = arith.constant 0 : i32
    %c0_i32_0 = arith.constant 0 : i32
    %c0_i32_1 = arith.constant 0 : i32
    return %c0_i32, %c0_i32_0 : i32, i32
  }
  func.func @transform_3(%arg0: i32) -> (i32, i32) {
    %c0_i32 = arith.constant 0 : i32
    %c0_i32_0 = arith.constant 0 : i32
    %c0_i32_1 = arith.constant 0 : i32
    return %c0_i32, %c0_i32_0 : i32, i32
  }
  func.func @transform_4(%arg0: i32) -> (i32, i32) {
    %c0_i32 = arith.constant 0 : i32
    %c0_i32_0 = arith.constant 0 : i32
    %c0_i32_1 = arith.constant 0 : i32
    return %c0_i32, %c0_i32_0 : i32, i32
  }
  func.func @transform_5(%arg0: i32) -> (i32, i32) {
    %c0_i32 = arith.constant 0 : i32
    %c0_i32_0 = arith.constant 0 : i32
    %c0_i32_1 = arith.constant 0 : i32
    return %c0_i32, %c0_i32_0 : i32, i32
  }
  func.func @transform_6(%arg0: i32) -> (i32, i32) {
    %c0_i32 = arith.constant 0 : i32
    %c0_i32_0 = arith.constant 0 : i32
    %c0_i32_1 = arith.constant 0 : i32
    return %c0_i32, %c0_i32_0 : i32, i32
  }
  func.func @transform_7(%arg0: i32) -> (i32, i32) {
    %c0_i32 = arith.constant 0 : i32
    %c0_i32_0 = arith.constant 0 : i32
    return %c0_i32, %arg0 : i32, i32
  }
}

</mosaic_0001>

<llo_original>
// kernel: latent_d_forward.1
$region0: #{latent_d_forward.1}
  #allocation0 [shape = 'u32[]', space=smem, size = 0x4, offset = 0x4, fixed_abs, tag = 'smem constant byte address 0x4 - core index']
  #allocation1 [shape = 'u32[144,128]{1,0:T(1,128)}', space=vmem, size = 0x12000, scoped, tag = 'internal scratch']
  #allocation2 [shape = 'f32[1,1]{1,0:T(1,128)S(1)}', space=vmem, size = 0x200, scoped, tag = 'scoped memory for latent_d_forward.1']
  %s0 = inlined_call_operand.vmem [shape: f32[8,32], index: 0, kind: input, shape index: {}]
  %s1 = inlined_call_operand.vmem [shape: bf16[512,32], index: 1, kind: input, shape index: {}]
  %s2 = inlined_call_operand.vmem [shape: f32[512,1], index: 2, kind: input, shape index: {}]
  %s3 = inlined_call_operand.vmem [shape: bf16[256,512], index: 3, kind: input, shape index: {}]
  %s4 = inlined_call_operand.vmem [shape: f32[256,1], index: 4, kind: input, shape index: {}]
  %s5 = inlined_call_operand.vmem [shape: f32[256,1], index: 5, kind: input, shape index: {}]
  %s6 = inlined_call_operand.<no memory space> [shape: f32[1,1], index: 6, kind: input, shape index: {}]
  %s7 = inlined_call_operand.hbm [shape: f32[1,8], index: 7, kind: output, shape index: {}]
  %s8 = sld [smem:[#allocation0]]
  $region38: #{latent_d_forward.1} parent=0
    _
  %s10 = ssub.s32 1, %s8
  %s11 = scalar_select 0, %s10, %s8
  %v12 = vstv %s6
  %13 = vst [vmem:[#allocation2] sm:$0x1] %v12
  $region1: #{latent_d_forward.1} parent=0
    #allocation3 [shape = 'u8[1024]{0}', space=vmem, size = 0x400, scoped, tag = 'output window, operand 0, single buffered']
    #allocation4 [shape = 's32[1]{0}', space=sflag, size = 0x4, scoped, tag = 'scoped memory for latent_d_forward.1']
    %14 = vsyncpa [#allocation4], 0
    // Predicated region
    $region2: #{latent_d_forward.1} parent=1 // pred_check
      _
    $region3: #{latent_d_forward.1} parent=1 // pred_check_branch
      %16 = sbr.rel (0) target = $region5
    $region4: #{latent_d_forward.1} parent=1 // pred_region
      _
    $region5: #{latent_d_forward.1} parent=1 // pred_fallthru
      _
    // Predicated region
    $region6: #{latent_d_forward.1} parent=1 // pred_check
      _
    $region7: #{latent_d_forward.1} parent=1 // pred_check_branch
      %18 = sbr.rel (0) target = $region9
    $region8: #{latent_d_forward.1} parent=1 // pred_region
      _
    $region9: #{latent_d_forward.1} parent=1 // pred_fallthru
      _
    // Predicated region
    $region10: #{latent_d_forward.1} parent=1 // pred_check
      _
    $region11: #{latent_d_forward.1} parent=1 // pred_check_branch
      %20 = sbr.rel (0) target = $region13
    $region12: #{latent_d_forward.1} parent=1 // pred_region
      _
    $region13: #{latent_d_forward.1} parent=1 // pred_fallthru
      _
    // Predicated region
    $region14: #{latent_d_forward.1} parent=1 // pred_check
      _
    $region15: #{latent_d_forward.1} parent=1 // pred_check_branch
      %22 = sbr.rel (0) target = $region17
    $region16: #{latent_d_forward.1} parent=1 // pred_region
      _
    $region17: #{latent_d_forward.1} parent=1 // pred_fallthru
      _
    // Predicated region
    $region18: #{latent_d_forward.1} parent=1 // pred_check
      _
    $region19: #{latent_d_forward.1} parent=1 // pred_check_branch
      %24 = sbr.rel (0) target = $region21
    $region20: #{latent_d_forward.1} parent=1 // pred_region
      _
    $region21: #{latent_d_forward.1} parent=1 // pred_fallthru
      _
    // Predicated region
    $region22: #{latent_d_forward.1} parent=1 // pred_check
      _
    $region23: #{latent_d_forward.1} parent=1 // pred_check_branch
      %26 = sbr.rel (0) target = $region25
    $region24: #{latent_d_forward.1} parent=1 // pred_region
      _
    $region25: #{latent_d_forward.1} parent=1 // pred_fallthru
      _
    // Predicated region
    $region26: #{latent_d_forward.1} parent=1 // pred_check
      _
    $region27: #{latent_d_forward.1} parent=1 // pred_check_branch
      %28 = sbr.rel (0) target = $region29
    $region28: #{latent_d_forward.1} parent=1 // pred_region
      _
    $region29: #{latent_d_forward.1} parent=1 // pred_fallthru
      _
    %v31 = vld [vmem:[%s0] sm:$0xff]
    %v32 = vld [vmem:[%s0 + $0x8] sm:$0xff]
    %v33 = vld [vmem:[%s0 + $0x10] sm:$0xff]
    %v34 = vld [vmem:[%s0 + $0x18] sm:$0xff]
    %v35 = vld [vmem:[%s0 + $0x20] sm:$0xff]
    %v36 = vld [vmem:[%s0 + $0x28] sm:$0xff]
    %v37 = vld [vmem:[%s0 + $0x30] sm:$0xff]
    %v38 = vld [vmem:[%s0 + $0x38] sm:$0xff]
    %v39 = vld [vmem:[%s0 + $0x40] sm:$0xff]
    %v40 = vld [vmem:[%s0 + $0x48] sm:$0xff]
    %v41 = vld [vmem:[%s0 + $0x50] sm:$0xff]
    %v42 = vld [vmem:[%s0 + $0x58] sm:$0xff]
    %v43 = vld [vmem:[%s0 + $0x60] sm:$0xff]
    %v44 = vld [vmem:[%s0 + $0x68] sm:$0xff]
    %v45 = vld [vmem:[%s0 + $0x70] sm:$0xff]
    %v46 = vld [vmem:[%s0 + $0x78] sm:$0xff]
    %v47 = vld [vmem:[%s0 + $0x80] sm:$0xff]
    %v48 = vld [vmem:[%s0 + $0x88] sm:$0xff]
    %v49 = vld [vmem:[%s0 + $0x90] sm:$0xff]
    %v50 = vld [vmem:[%s0 + $0x98] sm:$0xff]
    %v51 = vld [vmem:[%s0 + $0xa0] sm:$0xff]
    %v52 = vld [vmem:[%s0 + $0xa8] sm:$0xff]
    %v53 = vld [vmem:[%s0 + $0xb0] sm:$0xff]
    %v54 = vld [vmem:[%s0 + $0xb8] sm:$0xff]
    %v55 = vld [vmem:[%s0 + $0xc0] sm:$0xff]
    %v56 = vld [vmem:[%s0 + $0xc8] sm:$0xff]
    %v57 = vld [vmem:[%s0 + $0xd0] sm:$0xff]
    %v58 = vld [vmem:[%s0 + $0xd8] sm:$0xff]
    %v59 = vld [vmem:[%s0 + $0xe0] sm:$0xff]
    %v60 = vld [vmem:[%s0 + $0xe8] sm:$0xff]
    %v61 = vld [vmem:[%s0 + $0xf0] sm:$0xff]
    %v62 = vld [vmem:[%s0 + $0xf8] sm:$0xff]
    %v63 = vpack.c.bf16 %v32, %v31
    %v64 = vpack.c.bf16 %v34, %v33
    %v65 = vpack.c.bf16 %v36, %v35
    %v66 = vpack.c.bf16 %v38, %v37
    %v67 = vpack.c.bf16 %v40, %v39
    %v68 = vpack.c.bf16 %v42, %v41
    %v69 = vpack.c.bf16 %v44, %v43
    %v70 = vpack.c.bf16 %v46, %v45
    %v71 = vpack.c.bf16 %v48, %v47
    %v72 = vpack.c.bf16 %v50, %v49
    %v73 = vpack.c.bf16 %v52, %v51
    %v74 = vpack.c.bf16 %v54, %v53
    %v75 = vpack.c.bf16 %v56, %v55
    %v76 = vpack.c.bf16 %v58, %v57
    %v77 = vpack.c.bf16 %v60, %v59
    %v78 = vpack.c.bf16 %v62, %v61
    %v79 = vld [vmem:[%s1] sm:$0xf]
    %v80 = vld [vmem:[%s1 + $0x4] sm:$0xf]
    %v81 = vld [vmem:[%s1 + $0x8] sm:$0xf]
    %v82 = vld [vmem:[%s1 + $0xc] sm:$0xf]
    %v83 = vld [vmem:[%s1 + $0x10] sm:$0xf]
    %v84 = vld [vmem:[%s1 + $0x14] sm:$0xf]
    %v85 = vld [vmem:[%s1 + $0x18] sm:$0xf]
    %v86 = vld [vmem:[%s1 + $0x1c] sm:$0xf]
    %v87 = vld [vmem:[%s1 + $0x20] sm:$0xf]
    %v88 = vld [vmem:[%s1 + $0x24] sm:$0xf]
    %v89 = vld [vmem:[%s1 + $0x28] sm:$0xf]
    %v90 = vld [vmem:[%s1 + $0x2c] sm:$0xf]
    %v91 = vld [vmem:[%s1 + $0x30] sm:$0xf]
    %v92 = vld [vmem:[%s1 + $0x34] sm:$0xf]
    %v93 = vld [vmem:[%s1 + $0x38] sm:$0xf]
    %v94 = vld [vmem:[%s1 + $0x3c] sm:$0xf]
    %v95 = vld [vmem:[%s1 + $0x40] sm:$0xf]
    %v96 = vld [vmem:[%s1 + $0x44] sm:$0xf]
    %v97 = vld [vmem:[%s1 + $0x48] sm:$0xf]
    %v98 = vld [vmem:[%s1 + $0x4c] sm:$0xf]
    %v99 = vld [vmem:[%s1 + $0x50] sm:$0xf]
    %v100 = vld [vmem:[%s1 + $0x54] sm:$0xf]
    %v101 = vld [vmem:[%s1 + $0x58] sm:$0xf]
    %v102 = vld [vmem:[%s1 + $0x5c] sm:$0xf]
    %v103 = vld [vmem:[%s1 + $0x60] sm:$0xf]
    %v104 = vld [vmem:[%s1 + $0x64] sm:$0xf]
    %v105 = vld [vmem:[%s1 + $0x68] sm:$0xf]
    %v106 = vld [vmem:[%s1 + $0x6c] sm:$0xf]
    %v107 = vld [vmem:[%s1 + $0x70] sm:$0xf]
    %v108 = vld [vmem:[%s1 + $0x74] sm:$0xf]
    %v109 = vld [vmem:[%s1 + $0x78] sm:$0xf]
    %v110 = vld [vmem:[%s1 + $0x7c] sm:$0xf]
    %v111 = vld [vmem:[%s1 + $0x80] sm:$0xf]
    %v112 = vld [vmem:[%s1 + $0x84] sm:$0xf]
    %v113 = vld [vmem:[%s1 + $0x88] sm:$0xf]
    %v114 = vld [vmem:[%s1 + $0x8c] sm:$0xf]
    %v115 = vld [vmem:[%s1 + $0x90] sm:$0xf]
    %v116 = vld [vmem:[%s1 + $0x94] sm:$0xf]
    %v117 = vld [vmem:[%s1 + $0x98] sm:$0xf]
    %v118 = vld [vmem:[%s1 + $0x9c] sm:$0xf]
    %v119 = vld [vmem:[%s1 + $0xa0] sm:$0xf]
    %v120 = vld [vmem:[%s1 + $0xa4] sm:$0xf]
    %v121 = vld [vmem:[%s1 + $0xa8] sm:$0xf]
    %v122 = vld [vmem:[%s1 + $0xac] sm:$0xf]
    %v123 = vld [vmem:[%s1 + $0xb0] sm:$0xf]
    %v124 = vld [vmem:[%s1 + $0xb4] sm:$0xf]
    %v125 = vld [vmem:[%s1 + $0xb8] sm:$0xf]
    %v126 = vld [vmem:[%s1 + $0xbc] sm:$0xf]
    %v127 = vld [vmem:[%s1 + $0xc0] sm:$0xf]
    %v128 = vld [vmem:[%s1 + $0xc4] sm:$0xf]
    %v129 = vld [vmem:[%s1 + $0xc8] sm:$0xf]
    %v130 = vld [vmem:[%s1 + $0xcc] sm:$0xf]
    %v131 = vld [vmem:[%s1 + $0xd0] sm:$0xf]
    %v132 = vld [vmem:[%s1 + $0xd4] sm:$0xf]
    %v133 = vld [vmem:[%s1 + $0xd8] sm:$0xf]
    %v134 = vld [vmem:[%s1 + $0xdc] sm:$0xf]
    %v135 = vld [vmem:[%s1 + $0xe0] sm:$0xf]
    %v136 = vld [vmem:[%s1 + $0xe4] sm:$0xf]
    %v137 = vld [vmem:[%s1 + $0xe8] sm:$0xf]
    %v138 = vld [vmem:[%s1 + $0xec] sm:$0xf]
    %v139 = vld [vmem:[%s1 + $0xf0] sm:$0xf]
    %v140 = vld [vmem:[%s1 + $0xf4] sm:$0xf]
    %v141 = vld [vmem:[%s1 + $0xf8] sm:$0xf]
    %v142 = vld [vmem:[%s1 + $0xfc] sm:$0xf]
    %v143 = vld [vmem:[%s2] sm:$0xff]
    %v144 = vld [vmem:[%s2 + $0x8] sm:$0xff]
    %v145 = vld [vmem:[%s2 + $0x10] sm:$0xff]
    %v146 = vld [vmem:[%s2 + $0x18] sm:$0xff]
    %v147 = vld [vmem:[%s2 + $0x20] sm:$0xff]
    %v148 = vld [vmem:[%s2 + $0x28] sm:$0xff]
    %v149 = vld [vmem:[%s2 + $0x30] sm:$0xff]
    %v150 = vld [vmem:[%s2 + $0x38] sm:$0xff]
    %v151 = vld [vmem:[%s2 + $0x40] sm:$0xff]
    %v152 = vld [vmem:[%s2 + $0x48] sm:$0xff]
    %v153 = vld [vmem:[%s2 + $0x50] sm:$0xff]
    %v154 = vld [vmem:[%s2 + $0x58] sm:$0xff]
    %v155 = vld [vmem:[%s2 + $0x60] sm:$0xff]
    %v156 = vld [vmem:[%s2 + $0x68] sm:$0xff]
    %v157 = vld [vmem:[%s2 + $0x70] sm:$0xff]
    %v158 = vld [vmem:[%s2 + $0x78] sm:$0xff]
    %v159 = vld [vmem:[%s2 + $0x80] sm:$0xff]
    %v160 = vld [vmem:[%s2 + $0x88] sm:$0xff]
    %v161 = vld [vmem:[%s2 + $0x90] sm:$0xff]
    %v162 = vld [vmem:[%s2 + $0x98] sm:$0xff]
    %v163 = vld [vmem:[%s2 + $0xa0] sm:$0xff]
    %v164 = vld [vmem:[%s2 + $0xa8] sm:$0xff]
    %v165 = vld [vmem:[%s2 + $0xb0] sm:$0xff]
    %v166 = vld [vmem:[%s2 + $0xb8] sm:$0xff]
    %v167 = vld [vmem:[%s2 + $0xc0] sm:$0xff]
    %v168 = vld [vmem:[%s2 + $0xc8] sm:$0xff]
    %v169 = vld [vmem:[%s2 + $0xd0] sm:$0xff]
    %v170 = vld [vmem:[%s2 + $0xd8] sm:$0xff]
    %v171 = vld [vmem:[%s2 + $0xe0] sm:$0xff]
    %v172 = vld [vmem:[%s2 + $0xe8] sm:$0xff]
    %v173 = vld [vmem:[%s2 + $0xf0] sm:$0xff]
    %v174 = vld [vmem:[%s2 + $0xf8] sm:$0xff]
    %v175 = vld [vmem:[%s2 + $0x100] sm:$0xff]
    %v176 = vld [vmem:[%s2 + $0x108] sm:$0xff]
    %v177 = vld [vmem:[%s2 + $0x110] sm:$0xff]
    %v178 = vld [vmem:[%s2 + $0x118] sm:$0xff]
    %v179 = vld [vmem:[%s2 + $0x120] sm:$0xff]
    %v180 = vld [vmem:[%s2 + $0x128] sm:$0xff]
    %v181 = vld [vmem:[%s2 + $0x130] sm:$0xff]
    %v182 = vld [vmem:[%s2 + $0x138] sm:$0xff]
    %v183 = vld [vmem:[%s2 + $0x140] sm:$0xff]
    %v184 = vld [vmem:[%s2 + $0x148] sm:$0xff]
    %v185 = vld [vmem:[%s2 + $0x150] sm:$0xff]
    %v186 = vld [vmem:[%s2 + $0x158] sm:$0xff]
    %v187 = vld [vmem:[%s2 + $0x160] sm:$0xff]
    %v188 = vld [vmem:[%s2 + $0x168] sm:$0xff]
    %v189 = vld [vmem:[%s2 + $0x170] sm:$0xff]
    %v190 = vld [vmem:[%s2 + $0x178] sm:$0xff]
    %v191 = vld [vmem:[%s2 + $0x180] sm:$0xff]
    %v192 = vld [vmem:[%s2 + $0x188] sm:$0xff]
    %v193 = vld [vmem:[%s2 + $0x190] sm:$0xff]
    %v194 = vld [vmem:[%s2 + $0x198] sm:$0xff]
    %v195 = vld [vmem:[%s2 + $0x1a0] sm:$0xff]
    %v196 = vld [vmem:[%s2 + $0x1a8] sm:$0xff]
    %v197 = vld [vmem:[%s2 + $0x1b0] sm:$0xff]
    %v198 = vld [vmem:[%s2 + $0x1b8] sm:$0xff]
    %v199 = vld [vmem:[%s2 + $0x1c0] sm:$0xff]
    %v200 = vld [vmem:[%s2 + $0x1c8] sm:$0xff]
    %v201 = vld [vmem:[%s2 + $0x1d0] sm:$0xff]
    %v202 = vld [vmem:[%s2 + $0x1d8] sm:$0xff]
    %v203 = vld [vmem:[%s2 + $0x1e0] sm:$0xff]
    %v204 = vld [vmem:[%s2 + $0x1e8] sm:$0xff]
    %v205 = vld [vmem:[%s2 + $0x1f0] sm:$0xff]
    %v206 = vld [vmem:[%s2 + $0x1f8] sm:$0xff]
    %208 = vset.pattern.permute.xlu0 0
    %209 = vperm.xlu0 %208, %v143
    %v210 = vpop.permute.xlu0 %209
    %213 = vset.pattern.permute.xlu0 0
    %214 = vperm.xlu0 %213, %v144
    %v215 = vpop.permute.xlu0 %214
    %218 = vset.pattern.permute.xlu0 0
    %219 = vperm.xlu0 %218, %v145
    %v220 = vpop.permute.xlu0 %219
    %223 = vset.pattern.permute.xlu0 0
    %224 = vperm.xlu0 %223, %v146
    %v225 = vpop.permute.xlu0 %224
    %228 = vset.pattern.permute.xlu0 0
    %229 = vperm.xlu0 %228, %v147
    %v230 = vpop.permute.xlu0 %229
    %233 = vset.pattern.permute.xlu0 0
    %234 = vperm.xlu0 %233, %v148
    %v235 = vpop.permute.xlu0 %234
    %238 = vset.pattern.permute.xlu0 0
    %239 = vperm.xlu0 %238, %v149
    %v240 = vpop.permute.xlu0 %239
    %243 = vset.pattern.permute.xlu0 0
    %244 = vperm.xlu0 %243, %v150
    %v245 = vpop.permute.xlu0 %244
    %248 = vset.pattern.permute.xlu0 0
    %249 = vperm.xlu0 %248, %v151
    %v250 = vpop.permute.xlu0 %249
    %253 = vset.pattern.permute.xlu0 0
    %254 = vperm.xlu0 %253, %v152
    %v255 = vpop.permute.xlu0 %254
    %258 = vset.pattern.permute.xlu0 0
    %259 = vperm.xlu0 %258, %v153
    %v260 = vpop.permute.xlu0 %259
    %263 = vset.pattern.permute.xlu0 0
    %264 = vperm.xlu0 %263, %v154
    %v265 = vpop.permute.xlu0 %264
    %268 = vset.pattern.permute.xlu0 0
    %269 = vperm.xlu0 %268, %v155
    %v270 = vpop.permute.xlu0 %269
    %273 = vset.pattern.permute.xlu0 0
    %274 = vperm.xlu0 %273, %v156
    %v275 = vpop.permute.xlu0 %274
    %278 = vset.pattern.permute.xlu0 0
    %279 = vperm.xlu0 %278, %v157
    %v280 = vpop.permute.xlu0 %279
    %283 = vset.pattern.permute.xlu0 0
    %284 = vperm.xlu0 %283, %v158
    %v285 = vpop.permute.xlu0 %284
    %288 = vset.pattern.permute.xlu0 0
    %289 = vperm.xlu0 %288, %v159
    %v290 = vpop.permute.xlu0 %289
    %293 = vset.pattern.permute.xlu0 0
    %294 = vperm.xlu0 %293, %v160
    %v295 = vpop.permute.xlu0 %294
    %298 = vset.pattern.permute.xlu0 0
    %299 = vperm.xlu0 %298, %v161
    %v300 = vpop.permute.xlu0 %299
    %303 = vset.pattern.permute.xlu0 0
    %304 = vperm.xlu0 %303, %v162
    %v305 = vpop.permute.xlu0 %304
    %308 = vset.pattern.permute.xlu0 0
    %309 = vperm.xlu0 %308, %v163
    %v310 = vpop.permute.xlu0 %309
    %313 = vset.pattern.permute.xlu0 0
    %314 = vperm.xlu0 %313, %v164
    %v315 = vpop.permute.xlu0 %314
    %318 = vset.pattern.permute.xlu0 0
    %319 = vperm.xlu0 %318, %v165
    %v320 = vpop.permute.xlu0 %319
    %323 = vset.pattern.permute.xlu0 0
    %324 = vperm.xlu0 %323, %v166
    %v325 = vpop.permute.xlu0 %324
    %328 = vset.pattern.permute.xlu0 0
    %329 = vperm.xlu0 %328, %v167
    %v330 = vpop.permute.xlu0 %329
    %333 = vset.pattern.permute.xlu0 0
    %334 = vperm.xlu0 %333, %v168
    %v335 = vpop.permute.xlu0 %334
    %338 = vset.pattern.permute.xlu0 0
    %339 = vperm.xlu0 %338, %v169
    %v340 = vpop.permute.xlu0 %339
    %343 = vset.pattern.permute.xlu0 0
    %344 = vperm.xlu0 %343, %v170
    %v345 = vpop.permute.xlu0 %344
    %348 = vset.pattern.permute.xlu0 0
    %349 = vperm.xlu0 %348, %v171
    %v350 = vpop.permute.xlu0 %349
    %353 = vset.pattern.permute.xlu0 0
    %354 = vperm.xlu0 %353, %v172
    %v355 = vpop.permute.xlu0 %354
    %358 = vset.pattern.permute.xlu0 0
    %359 = vperm.xlu0 %358, %v173
    %v360 = vpop.permute.xlu0 %359
    %363 = vset.pattern.permute.xlu0 0
    %364 = vperm.xlu0 %363, %v174
    %v365 = vpop.permute.xlu0 %364
    %368 = vset.pattern.permute.xlu0 0
    %369 = vperm.xlu0 %368, %v175
    %v370 = vpop.permute.xlu0 %369
    %373 = vset.pattern.permute.xlu0 0
    %374 = vperm.xlu0 %373, %v176
    %v375 = vpop.permute.xlu0 %374
    %378 = vset.pattern.permute.xlu0 0
    %379 = vperm.xlu0 %378, %v177
    %v380 = vpop.permute.xlu0 %379
    %383 = vset.pattern.permute.xlu0 0
    %384 = vperm.xlu0 %383, %v178
    %v385 = vpop.permute.xlu0 %384
    %388 = vset.pattern.permute.xlu0 0
    %389 = vperm.xlu0 %388, %v179
    %v390 = vpop.permute.xlu0 %389
    %393 = vset.pattern.permute.xlu0 0
    %394 = vperm.xlu0 %393, %v180
    %v395 = vpop.permute.xlu0 %394
    %398 = vset.pattern.permute.xlu0 0
    %399 = vperm.xlu0 %398, %v181
    %v400 = vpop.permute.xlu0 %399
    %403 = vset.pattern.permute.xlu0 0
    %404 = vperm.xlu0 %403, %v182
    %v405 = vpop.permute.xlu0 %404
    %408 = vset.pattern.permute.xlu0 0
    %409 = vperm.xlu0 %408, %v183
    %v410 = vpop.permute.xlu0 %409
    %413 = vset.pattern.permute.xlu0 0
    %414 = vperm.xlu0 %413, %v184
    %v415 = vpop.permute.xlu0 %414
    %418 = vset.pattern.permute.xlu0 0
    %419 = vperm.xlu0 %418, %v185
    %v420 = vpop.permute.xlu0 %419
    %423 = vset.pattern.permute.xlu0 0
    %424 = vperm.xlu0 %423, %v186
    %v425 = vpop.permute.xlu0 %424
    %428 = vset.pattern.permute.xlu0 0
    %429 = vperm.xlu0 %428, %v187
    %v430 = vpop.permute.xlu0 %429
    %433 = vset.pattern.permute.xlu0 0
    %434 = vperm.xlu0 %433, %v188
    %v435 = vpop.permute.xlu0 %434
    %438 = vset.pattern.permute.xlu0 0
    %439 = vperm.xlu0 %438, %v189
    %v440 = vpop.permute.xlu0 %439
    %443 = vset.pattern.permute.xlu0 0
    %444 = vperm.xlu0 %443, %v190
    %v445 = vpop.permute.xlu0 %444
    %448 = vset.pattern.permute.xlu0 0
    %449 = vperm.xlu0 %448, %v191
    %v450 = vpop.permute.xlu0 %449
    %453 = vset.pattern.permute.xlu0 0
    %454 = vperm.xlu0 %453, %v192
    %v455 = vpop.permute.xlu0 %454
    %458 = vset.pattern.permute.xlu0 0
    %459 = vperm.xlu0 %458, %v193
    %v460 = vpop.permute.xlu0 %459
    %463 = vset.pattern.permute.xlu0 0
    %464 = vperm.xlu0 %463, %v194
    %v465 = vpop.permute.xlu0 %464
    %468 = vset.pattern.permute.xlu0 0
    %469 = vperm.xlu0 %468, %v195
    %v470 = vpop.permute.xlu0 %469
    %473 = vset.pattern.permute.xlu0 0
    %474 = vperm.xlu0 %473, %v196
    %v475 = vpop.permute.xlu0 %474
    %478 = vset.pattern.permute.xlu0 0
    %479 = vperm.xlu0 %478, %v197
    %v480 = vpop.permute.xlu0 %479
    %483 = vset.pattern.permute.xlu0 0
    %484 = vperm.xlu0 %483, %v198
    %v485 = vpop.permute.xlu0 %484
    %488 = vset.pattern.permute.xlu0 0
    %489 = vperm.xlu0 %488, %v199
    %v490 = vpop.permute.xlu0 %489
    %493 = vset.pattern.permute.xlu0 0
    %494 = vperm.xlu0 %493, %v200
    %v495 = vpop.permute.xlu0 %494
    %498 = vset.pattern.permute.xlu0 0
    %499 = vperm.xlu0 %498, %v201
    %v500 = vpop.permute.xlu0 %499
    %503 = vset.pattern.permute.xlu0 0
    %504 = vperm.xlu0 %503, %v202
    %v505 = vpop.permute.xlu0 %504
    %508 = vset.pattern.permute.xlu0 0
    %509 = vperm.xlu0 %508, %v203
    %v510 = vpop.permute.xlu0 %509
    %513 = vset.pattern.permute.xlu0 0
    %514 = vperm.xlu0 %513, %v204
    %v515 = vpop.permute.xlu0 %514
    %518 = vset.pattern.permute.xlu0 0
    %519 = vperm.xlu0 %518, %v205
    %v520 = vpop.permute.xlu0 %519
    %523 = vset.pattern.permute.xlu0 0
    %524 = vperm.xlu0 %523, %v206
    %v525 = vpop.permute.xlu0 %524
    %v591 = vunpack.c.l.b16 %v79
    %v592 = vunpack.c.l.b16 %v80
    %v593 = vunpack.c.l.b16 %v81
    %v594 = vunpack.c.l.b16 %v82
    %v595 = vunpack.c.l.b16 %v83
    %v596 = vunpack.c.l.b16 %v84
    %v597 = vunpack.c.l.b16 %v85
    %v598 = vunpack.c.l.b16 %v86
    %v599 = vunpack.c.l.b16 %v87
    %v600 = vunpack.c.l.b16 %v88
    %v601 = vunpack.c.l.b16 %v89
    %v602 = vunpack.c.l.b16 %v90
    %v603 = vunpack.c.l.b16 %v91
    %v604 = vunpack.c.l.b16 %v92
    %v605 = vunpack.c.l.b16 %v93
    %v606 = vunpack.c.l.b16 %v94
    %v607 = vunpack.c.l.b16 %v95
    %v608 = vunpack.c.l.b16 %v96
    %v609 = vunpack.c.l.b16 %v97
    %v610 = vunpack.c.l.b16 %v98
    %v611 = vunpack.c.l.b16 %v99
    %v612 = vunpack.c.l.b16 %v100
    %v613 = vunpack.c.l.b16 %v101
    %v614 = vunpack.c.l.b16 %v102
    %v615 = vunpack.c.l.b16 %v103
    %v616 = vunpack.c.l.b16 %v104
    %v617 = vunpack.c.l.b16 %v105
    %v618 = vunpack.c.l.b16 %v106
    %v619 = vunpack.c.l.b16 %v107
    %v620 = vunpack.c.l.b16 %v108
    %v621 = vunpack.c.l.b16 %v109
    %v622 = vunpack.c.l.b16 %v110
    %v623 = vunpack.c.l.b16 %v111
    %v624 = vunpack.c.l.b16 %v112
    %v625 = vunpack.c.l.b16 %v113
    %v626 = vunpack.c.l.b16 %v114
    %v627 = vunpack.c.l.b16 %v115
    %v628 = vunpack.c.l.b16 %v116
    %v629 = vunpack.c.l.b16 %v117
    %v630 = vunpack.c.l.b16 %v118
    %v631 = vunpack.c.l.b16 %v119
    %v632 = vunpack.c.l.b16 %v120
    %v633 = vunpack.c.l.b16 %v121
    %v634 = vunpack.c.l.b16 %v122
    %v635 = vunpack.c.l.b16 %v123
    %v636 = vunpack.c.l.b16 %v124
    %v637 = vunpack.c.l.b16 %v125
    %v638 = vunpack.c.l.b16 %v126
    %v639 = vunpack.c.l.b16 %v127
    %v640 = vunpack.c.l.b16 %v128
    %v641 = vunpack.c.l.b16 %v129
    %v642 = vunpack.c.l.b16 %v130
    %v643 = vunpack.c.l.b16 %v131
    %v644 = vunpack.c.l.b16 %v132
    %v645 = vunpack.c.l.b16 %v133
    %v646 = vunpack.c.l.b16 %v134
    %v647 = vunpack.c.l.b16 %v135
    %v648 = vunpack.c.l.b16 %v136
    %v649 = vunpack.c.l.b16 %v137
    %v650 = vunpack.c.l.b16 %v138
    %v651 = vunpack.c.l.b16 %v139
    %v652 = vunpack.c.l.b16 %v140
    %v653 = vunpack.c.l.b16 %v141
    %v654 = vunpack.c.l.b16 %v142
    %v655 = vpack.c.b16 %v592, %v591
    %v656 = vpack.c.b16 %v594, %v593
    %v657 = vpack.c.b16 %v596, %v595
    %v658 = vpack.c.b16 %v598, %v597
    %v659 = vpack.c.b16 %v600, %v599
    %v660 = vpack.c.b16 %v602, %v601
    %v661 = vpack.c.b16 %v604, %v603
    %v662 = vpack.c.b16 %v606, %v605
    %v663 = vpack.c.b16 %v608, %v607
    %v664 = vpack.c.b16 %v610, %v609
    %v665 = vpack.c.b16 %v612, %v611
    %v666 = vpack.c.b16 %v614, %v613
    %v667 = vpack.c.b16 %v616, %v615
    %v668 = vpack.c.b16 %v618, %v617
    %v669 = vpack.c.b16 %v620, %v619
    %v670 = vpack.c.b16 %v622, %v621
    %v671 = vpack.c.b16 %v624, %v623
    %v672 = vpack.c.b16 %v626, %v625
    %v673 = vpack.c.b16 %v628, %v627
    %v674 = vpack.c.b16 %v630, %v629
    %v675 = vpack.c.b16 %v632, %v631
    %v676 = vpack.c.b16 %v634, %v633
    %v677 = vpack.c.b16 %v636, %v635
    %v678 = vpack.c.b16 %v638, %v637
    %v679 = vpack.c.b16 %v640, %v639
    %v680 = vpack.c.b16 %v642, %v641
    %v681 = vpack.c.b16 %v644, %v643
    %v682 = vpack.c.b16 %v646, %v645
    %v683 = vpack.c.b16 %v648, %v647
    %v684 = vpack.c.b16 %v650, %v649
    %v685 = vpack.c.b16 %v652, %v651
    %v686 = vpack.c.b16 %v654, %v653
    %vm687 = vcmask 261120
    %v689 = vsel %vm687, %v655, 0
    %v692 = vsel %vm687, %v656, 0
    %v695 = vsel %vm687, %v657, 0
    %v698 = vsel %vm687, %v658, 0
    %v701 = vsel %vm687, %v659, 0
    %v704 = vsel %vm687, %v660, 0
    %v707 = vsel %vm687, %v661, 0
    %v710 = vsel %vm687, %v662, 0
    %v713 = vsel %vm687, %v663, 0
    %v716 = vsel %vm687, %v664, 0
    %v719 = vsel %vm687, %v665, 0
    %v722 = vsel %vm687, %v666, 0
    %v725 = vsel %vm687, %v667, 0
    %v728 = vsel %vm687, %v668, 0
    %v731 = vsel %vm687, %v669, 0
    %v734 = vsel %vm687, %v670, 0
    %v737 = vsel %vm687, %v671, 0
    %v740 = vsel %vm687, %v672, 0
    %v743 = vsel %vm687, %v673, 0
    %v746 = vsel %vm687, %v674, 0
    %v749 = vsel %vm687, %v675, 0
    %v752 = vsel %vm687, %v676, 0
    %v755 = vsel %vm687, %v677, 0
    %v758 = vsel %vm687, %v678, 0
    %v761 = vsel %vm687, %v679, 0
    %v764 = vsel %vm687, %v680, 0
    %v767 = vsel %vm687, %v681, 0
    %v770 = vsel %vm687, %v682, 0
    %v773 = vsel %vm687, %v683, 0
    %v776 = vsel %vm687, %v684, 0
    %v779 = vsel %vm687, %v685, 0
    %v782 = vsel %vm687, %v686, 0
    %v785 = vsel %vm687, %v63, 0
    %v788 = vsel %vm687, %v64, 0
    %v791 = vsel %vm687, %v65, 0
    %v794 = vsel %vm687, %v66, 0
    %v797 = vsel %vm687, %v67, 0
    %v800 = vsel %vm687, %v68, 0
    %v803 = vsel %vm687, %v69, 0
    %v806 = vsel %vm687, %v70, 0
    %v809 = vsel %vm687, %v71, 0
    %v812 = vsel %vm687, %v72, 0
    %v815 = vsel %vm687, %v73, 0
    %v818 = vsel %vm687, %v74, 0
    %v821 = vsel %vm687, %v75, 0
    %v824 = vsel %vm687, %v76, 0
    %v827 = vsel %vm687, %v77, 0
    %v830 = vsel %vm687, %v78, 0
    %832 = vmatprep.subr.bf16.mxu0 0
    %833 = vmatpush1.bf16.xpose.msra.mxu0 %v785
    %834 = vmatprep.subr.bf16.mxu0 0
    %835 = vmatpush1.bf16.xpose.msra.mxu0 %v788
    %836 = vmatprep.subr.bf16.mxu0 0
    %837 = vmatpush1.bf16.xpose.msra.mxu0 %v791
    %838 = vmatprep.subr.bf16.mxu0 0
    %839 = vmatpush1.bf16.xpose.msra.mxu0 %v794
    %840 = vmatprep.subr.bf16.mxu0 0
    %841 = vmatpush1.bf16.xpose.msra.mxu0 %v797
    %842 = vmatprep.subr.bf16.mxu0 0
    %843 = vmatpush1.bf16.xpose.msra.mxu0 %v800
    %844 = vmatprep.subr.bf16.mxu0 0
    %845 = vmatpush1.bf16.xpose.msra.mxu0 %v803
    %846 = vmatprep.subr.bf16.mxu0 0
    %847 = vmatpush1.bf16.xpose.msra.mxu0 %v806
    %848 = vmatprep.subr.bf16.mxu0 0
    %849 = vmatpush1.bf16.xpose.msra.mxu0 %v809
    %850 = vmatprep.subr.bf16.mxu0 0
    %851 = vmatpush1.bf16.xpose.msra.mxu0 %v812
    %852 = vmatprep.subr.bf16.mxu0 0
    %853 = vmatpush1.bf16.xpose.msra.mxu0 %v815
    %854 = vmatprep.subr.bf16.mxu0 0
    %855 = vmatpush1.bf16.xpose.msra.mxu0 %v818
    %856 = vmatprep.subr.bf16.mxu0 0
    %857 = vmatpush1.bf16.xpose.msra.mxu0 %v821
    %858 = vmatprep.subr.bf16.mxu0 0
    %859 = vmatpush1.bf16.xpose.msra.mxu0 %v824
    %860 = vmatprep.subr.bf16.mxu0 0
    %861 = vmatpush1.bf16.xpose.msra.mxu0 %v827
    %862 = vmatprep.subr.bf16.mxu0 0
    %863 = vmatpush1.bf16.xpose.msra.mxu0 %v830
    %864 = vmatprep.mubr.bf16.mxu0 0
    %865 = vmatmul.mubr.bf16.gmra.mrb[0].mxu0 %v689
    %v866 = vpop.f32.mrb[0].mxu0
    %v867 = vadd.f32 %v210, %v866
    %v868 = vpop.f32.mrb[0].mxu0
    %v869 = vadd.f32 %v210, %v868
    %v870 = vpop.f32.mrb[0].mxu0
    %v871 = vadd.f32 %v215, %v870
    %v872 = vpop.f32.mrb[0].mxu0
    %v873 = vadd.f32 %v215, %v872
    %874 = vmatprep.mubr.bf16.mxu0 0
    %875 = vmatmul.mubr.bf16.gmra.mrb[0].mxu0 %v692
    %v876 = vpop.f32.mrb[0].mxu0
    %v877 = vadd.f32 %v220, %v876
    %v878 = vpop.f32.mrb[0].mxu0
    %v879 = vadd.f32 %v220, %v878
    %v880 = vpop.f32.mrb[0].mxu0
    %v881 = vadd.f32 %v225, %v880
    %v882 = vpop.f32.mrb[0].mxu0
    %v883 = vadd.f32 %v225, %v882
    %884 = vmatprep.mubr.bf16.mxu0 0
    %885 = vmatmul.mubr.bf16.gmra.mrb[0].mxu0 %v695
    %v886 = vpop.f32.mrb[0].mxu0
    %v887 = vadd.f32 %v230, %v886
    %v888 = vpop.f32.mrb[0].mxu0
    %v889 = vadd.f32 %v230, %v888
    %v890 = vpop.f32.mrb[0].mxu0
    %v891 = vadd.f32 %v235, %v890
    %v892 = vpop.f32.mrb[0].mxu0
    %v893 = vadd.f32 %v235, %v892
    %894 = vmatprep.mubr.bf16.mxu0 0
    %895 = vmatmul.mubr.bf16.gmra.mrb[0].mxu0 %v698
    %v896 = vpop.f32.mrb[0].mxu0
    %v897 = vadd.f32 %v240, %v896
    %v898 = vpop.f32.mrb[0].mxu0
    %v899 = vadd.f32 %v240, %v898
    %v900 = vpop.f32.mrb[0].mxu0
    %v901 = vadd.f32 %v245, %v900
    %v902 = vpop.f32.mrb[0].mxu0
    %v903 = vadd.f32 %v245, %v902
    %904 = vmatprep.mubr.bf16.mxu0 0
    %905 = vmatmul.mubr.bf16.gmra.mrb[0].mxu0 %v701
    %v906 = vpop.f32.mrb[0].mxu0
    %v907 = vadd.f32 %v250, %v906
    %v908 = vpop.f32.mrb[0].mxu0
    %v909 = vadd.f32 %v250, %v908
    %v910 = vpop.f32.mrb[0].mxu0
    %v911 = vadd.f32 %v255, %v910
    %v912 = vpop.f32.mrb[0].mxu0
    %v913 = vadd.f32 %v255, %v912
    %914 = vmatprep.mubr.bf16.mxu0 0
    %915 = vmatmul.mubr.bf16.gmra.mrb[0].mxu0 %v704
    %v916 = vpop.f32.mrb[0].mxu0
    %v917 = vadd.f32 %v260, %v916
    %v918 = vpop.f32.mrb[0].mxu0
    %v919 = vadd.f32 %v260, %v918
    %v920 = vpop.f32.mrb[0].mxu0
    %v921 = vadd.f32 %v265, %v920
    %v922 = vpop.f32.mrb[0].mxu0
    %v923 = vadd.f32 %v265, %v922
    %924 = vmatprep.mubr.bf16.mxu0 0
    %925 = vmatmul.mubr.bf16.gmra.mrb[0].mxu0 %v707
    %v926 = vpop.f32.mrb[0].mxu0
    %v927 = vadd.f32 %v270, %v926
    %v928 = vpop.f32.mrb[0].mxu0
    %v929 = vadd.f32 %v270, %v928
    %v930 = vpop.f32.mrb[0].mxu0
    %v931 = vadd.f32 %v275, %v930
    %v932 = vpop.f32.mrb[0].mxu0
    %v933 = vadd.f32 %v275, %v932
    %934 = vmatprep.mubr.bf16.mxu0 0
    %935 = vmatmul.mubr.bf16.gmra.mrb[0].mxu0 %v710
    %v936 = vpop.f32.mrb[0].mxu0
    %v937 = vadd.f32 %v280, %v936
    %v938 = vpop.f32.mrb[0].mxu0
    %v939 = vadd.f32 %v280, %v938
    %v940 = vpop.f32.mrb[0].mxu0
    %v941 = vadd.f32 %v285, %v940
    %v942 = vpop.f32.mrb[0].mxu0
    %v943 = vadd.f32 %v285, %v942
    %944 = vmatprep.mubr.bf16.mxu0 0
    %945 = vmatmul.mubr.bf16.gmra.mrb[0].mxu0 %v713
    %v946 = vpop.f32.mrb[0].mxu0
    %v947 = vadd.f32 %v290, %v946
    %v948 = vpop.f32.mrb[0].mxu0
    %v949 = vadd.f32 %v290, %v948
    %v950 = vpop.f32.mrb[0].mxu0
    %v951 = vadd.f32 %v295, %v950
    %v952 = vpop.f32.mrb[0].mxu0
    %v953 = vadd.f32 %v295, %v952
    %954 = vmatprep.mubr.bf16.mxu0 0
    %955 = vmatmul.mubr.bf16.gmra.mrb[0].mxu0 %v716
    %v956 = vpop.f32.mrb[0].mxu0
    %v957 = vadd.f32 %v300, %v956
    %v958 = vpop.f32.mrb[0].mxu0
    %v959 = vadd.f32 %v300, %v958
    %v960 = vpop.f32.mrb[0].mxu0
    %v961 = vadd.f32 %v305, %v960
    %v962 = vpop.f32.mrb[0].mxu0
    %v963 = vadd.f32 %v305, %v962
    %964 = vmatprep.mubr.bf16.mxu0 0
    %965 = vmatmul.mubr.bf16.gmra.mrb[0].mxu0 %v719
    %v966 = vpop.f32.mrb[0].mxu0
    %v967 = vadd.f32 %v310, %v966
    %v968 = vpop.f32.mrb[0].mxu0
    %v969 = vadd.f32 %v310, %v968
    %v970 = vpop.f32.mrb[0].mxu0
    %v971 = vadd.f32 %v315, %v970
    %v972 = vpop.f32.mrb[0].mxu0
    %v973 = vadd.f32 %v315, %v972
    %974 = vmatprep.mubr.bf16.mxu0 0
    %975 = vmatmul.mubr.bf16.gmra.mrb[0].mxu0 %v722
    %v976 = vpop.f32.mrb[0].mxu0
    %v977 = vadd.f32 %v320, %v976
    %v978 = vpop.f32.mrb[0].mxu0
    %v979 = vadd.f32 %v320, %v978
    %v980 = vpop.f32.mrb[0].mxu0
    %v981 = vadd.f32 %v325, %v980
    %v982 = vpop.f32.mrb[0].mxu0
    %v983 = vadd.f32 %v325, %v982
    %984 = vmatprep.mubr.bf16.mxu0 0
    %985 = vmatmul.mubr.bf16.gmra.mrb[0].mxu0 %v725
    %v986 = vpop.f32.mrb[0].mxu0
    %v987 = vadd.f32 %v330, %v986
    %v988 = vpop.f32.mrb[0].mxu0
    %v989 = vadd.f32 %v330, %v988
    %v990 = vpop.f32.mrb[0].mxu0
    %v991 = vadd.f32 %v335, %v990
    %v992 = vpop.f32.mrb[0].mxu0
    %v993 = vadd.f32 %v335, %v992
    %994 = vmatprep.mubr.bf16.mxu0 0
    %995 = vmatmul.mubr.bf16.gmra.mrb[0].mxu0 %v728
    %v996 = vpop.f32.mrb[0].mxu0
    %v997 = vadd.f32 %v340, %v996
    %v998 = vpop.f32.mrb[0].mxu0
    %v999 = vadd.f32 %v340, %v998
    %v1000 = vpop.f32.mrb[0].mxu0
    %v1001 = vadd.f32 %v345, %v1000
    %v1002 = vpop.f32.mrb[0].mxu0
    %v1003 = vadd.f32 %v345, %v1002
    %1004 = vmatprep.mubr.bf16.mxu0 0
    %1005 = vmatmul.mubr.bf16.gmra.mrb[0].mxu0 %v731
    %v1006 = vpop.f32.mrb[0].mxu0
    %v1007 = vadd.f32 %v350, %v1006
    %v1008 = vpop.f32.mrb[0].mxu0
    %v1009 = vadd.f32 %v350, %v1008
    %v1010 = vpop.f32.mrb[0].mxu0
    %v1011 = vadd.f32 %v355, %v1010
    %v1012 = vpop.f32.mrb[0].mxu0
    %v1013 = vadd.f32 %v355, %v1012
    %1014 = vmatprep.mubr.bf16.mxu0 0
    %1015 = vmatmul.mubr.bf16.gmra.mrb[0].mxu0 %v734
    %v1016 = vpop.f32.mrb[0].mxu0
    %v1017 = vadd.f32 %v360, %v1016
    %v1018 = vpop.f32.mrb[0].mxu0
    %v1019 = vadd.f32 %v360, %v1018
    %v1020 = vpop.f32.mrb[0].mxu0
    %v1021 = vadd.f32 %v365, %v1020
    %v1022 = vpop.f32.mrb[0].mxu0
    %v1023 = vadd.f32 %v365, %v1022
    %1024 = vmatprep.mubr.bf16.mxu0 0
    %1025 = vmatmul.mubr.bf16.gmra.mrb[0].mxu0 %v737
    %v1026 = vpop.f32.mrb[0].mxu0
    %v1027 = vadd.f32 %v370, %v1026
    %v1028 = vpop.f32.mrb[0].mxu0
    %v1029 = vadd.f32 %v370, %v1028
    %v1030 = vpop.f32.mrb[0].mxu0
    %v1031 = vadd.f32 %v375, %v1030
    %v1032 = vpop.f32.mrb[0].mxu0
    %v1033 = vadd.f32 %v375, %v1032
    %1034 = vmatprep.mubr.bf16.mxu0 0
    %1035 = vmatmul.mubr.bf16.gmra.mrb[0].mxu0 %v740
    %v1036 = vpop.f32.mrb[0].mxu0
    %v1037 = vadd.f32 %v380, %v1036
    %v1038 = vpop.f32.mrb[0].mxu0
    %v1039 = vadd.f32 %v380, %v1038
    %v1040 = vpop.f32.mrb[0].mxu0
    %v1041 = vadd.f32 %v385, %v1040
    %v1042 = vpop.f32.mrb[0].mxu0
    %v1043 = vadd.f32 %v385, %v1042
    %1044 = vmatprep.mubr.bf16.mxu0 0
    %1045 = vmatmul.mubr.bf16.gmra.mrb[0].mxu0 %v743
    %v1046 = vpop.f32.mrb[0].mxu0
    %v1047 = vadd.f32 %v390, %v1046
    %v1048 = vpop.f32.mrb[0].mxu0
    %v1049 = vadd.f32 %v390, %v1048
    %v1050 = vpop.f32.mrb[0].mxu0
    %v1051 = vadd.f32 %v395, %v1050
    %v1052 = vpop.f32.mrb[0].mxu0
    %v1053 = vadd.f32 %v395, %v1052
    %1054 = vmatprep.mubr.bf16.mxu0 0
    %1055 = vmatmul.mubr.bf16.gmra.mrb[0].mxu0 %v746
    %v1056 = vpop.f32.mrb[0].mxu0
    %v1057 = vadd.f32 %v400, %v1056
    %v1058 = vpop.f32.mrb[0].mxu0
    %v1059 = vadd.f32 %v400, %v1058
    %v1060 = vpop.f32.mrb[0].mxu0
    %v1061 = vadd.f32 %v405, %v1060
    %v1062 = vpop.f32.mrb[0].mxu0
    %v1063 = vadd.f32 %v405, %v1062
    %1064 = vmatprep.mubr.bf16.mxu0 0
    %1065 = vmatmul.mubr.bf16.gmra.mrb[0].mxu0 %v749
    %v1066 = vpop.f32.mrb[0].mxu0
    %v1067 = vadd.f32 %v410, %v1066
    %v1068 = vpop.f32.mrb[0].mxu0
    %v1069 = vadd.f32 %v410, %v1068
    %v1070 = vpop.f32.mrb[0].mxu0
    %v1071 = vadd.f32 %v415, %v1070
    %v1072 = vpop.f32.mrb[0].mxu0
    %v1073 = vadd.f32 %v415, %v1072
    %1074 = vmatprep.mubr.bf16.mxu0 0
    %1075 = vmatmul.mubr.bf16.gmra.mrb[0].mxu0 %v752
    %v1076 = vpop.f32.mrb[0].mxu0
    %v1077 = vadd.f32 %v420, %v1076
    %v1078 = vpop.f32.mrb[0].mxu0
    %v1079 = vadd.f32 %v420, %v1078
    %v1080 = vpop.f32.mrb[0].mxu0
    %v1081 = vadd.f32 %v425, %v1080
    %v1082 = vpop.f32.mrb[0].mxu0
    %v1083 = vadd.f32 %v425, %v1082
    %1084 = vmatprep.mubr.bf16.mxu0 0
    %1085 = vmatmul.mubr.bf16.gmra.mrb[0].mxu0 %v755
    %v1086 = vpop.f32.mrb[0].mxu0
    %v1087 = vadd.f32 %v430, %v1086
    %v1088 = vpop.f32.mrb[0].mxu0
    %v1089 = vadd.f32 %v430, %v1088
    %v1090 = vpop.f32.mrb[0].mxu0
    %v1091 = vadd.f32 %v435, %v1090
    %v1092 = vpop.f32.mrb[0].mxu0
    %v1093 = vadd.f32 %v435, %v1092
    %1094 = vmatprep.mubr.bf16.mxu0 0
    %1095 = vmatmul.mubr.bf16.gmra.mrb[0].mxu0 %v758
    %v1096 = vpop.f32.mrb[0].mxu0
    %v1097 = vadd.f32 %v440, %v1096
    %v1098 = vpop.f32.mrb[0].mxu0
    %v1099 = vadd.f32 %v440, %v1098
    %v1100 = vpop.f32.mrb[0].mxu0
    %v1101 = vadd.f32 %v445, %v1100
    %v1102 = vpop.f32.mrb[0].mxu0
    %v1103 = vadd.f32 %v445, %v1102
    %1104 = vmatprep.mubr.bf16.mxu0 0
    %1105 = vmatmul.mubr.bf16.gmra.mrb[0].mxu0 %v761
    %v1106 = vpop.f32.mrb[0].mxu0
    %v1107 = vadd.f32 %v450, %v1106
    %v1108 = vpop.f32.mrb[0].mxu0
    %v1109 = vadd.f32 %v450, %v1108
    %v1110 = vpop.f32.mrb[0].mxu0
    %v1111 = vadd.f32 %v455, %v1110
    %v1112 = vpop.f32.mrb[0].mxu0
    %v1113 = vadd.f32 %v455, %v1112
    %1114 = vmatprep.mubr.bf16.mxu0 0
    %1115 = vmatmul.mubr.bf16.gmra.mrb[0].mxu0 %v764
    %v1116 = vpop.f32.mrb[0].mxu0
    %v1117 = vadd.f32 %v460, %v1116
    %v1118 = vpop.f32.mrb[0].mxu0
    %v1119 = vadd.f32 %v460, %v1118
    %v1120 = vpop.f32.mrb[0].mxu0
    %v1121 = vadd.f32 %v465, %v1120
    %v1122 = vpop.f32.mrb[0].mxu0
    %v1123 = vadd.f32 %v465, %v1122
    %1124 = vmatprep.mubr.bf16.mxu0 0
    %1125 = vmatmul.mubr.bf16.gmra.mrb[0].mxu0 %v767
    %v1126 = vpop.f32.mrb[0].mxu0
    %v1127 = vadd.f32 %v470, %v1126
    %v1128 = vpop.f32.mrb[0].mxu0
    %v1129 = vadd.f32 %v470, %v1128
    %v1130 = vpop.f32.mrb[0].mxu0
    %v1131 = vadd.f32 %v475, %v1130
    %v1132 = vpop.f32.mrb[0].mxu0
    %v1133 = vadd.f32 %v475, %v1132
    %1134 = vmatprep.mubr.bf16.mxu0 0
    %1135 = vmatmul.mubr.bf16.gmra.mrb[0].mxu0 %v770
    %v1136 = vpop.f32.mrb[0].mxu0
    %v1137 = vadd.f32 %v480, %v1136
    %v1138 = vpop.f32.mrb[0].mxu0
    %v1139 = vadd.f32 %v480, %v1138
    %v1140 = vpop.f32.mrb[0].mxu0
    %v1141 = vadd.f32 %v485, %v1140
    %v1142 = vpop.f32.mrb[0].mxu0
    %v1143 = vadd.f32 %v485, %v1142
    %1144 = vmatprep.mubr.bf16.mxu0 0
    %1145 = vmatmul.mubr.bf16.gmra.mrb[0].mxu0 %v773
    %v1146 = vpop.f32.mrb[0].mxu0
    %v1147 = vadd.f32 %v490, %v1146
    %v1148 = vpop.f32.mrb[0].mxu0
    %v1149 = vadd.f32 %v490, %v1148
    %v1150 = vpop.f32.mrb[0].mxu0
    %v1151 = vadd.f32 %v495, %v1150
    %v1152 = vpop.f32.mrb[0].mxu0
    %v1153 = vadd.f32 %v495, %v1152
    %1154 = vmatprep.mubr.bf16.mxu0 0
    %1155 = vmatmul.mubr.bf16.gmra.mrb[0].mxu0 %v776
    %v1156 = vpop.f32.mrb[0].mxu0
    %v1157 = vadd.f32 %v500, %v1156
    %v1158 = vpop.f32.mrb[0].mxu0
    %v1159 = vadd.f32 %v500, %v1158
    %v1160 = vpop.f32.mrb[0].mxu0
    %v1161 = vadd.f32 %v505, %v1160
    %v1162 = vpop.f32.mrb[0].mxu0
    %v1163 = vadd.f32 %v505, %v1162
    %1164 = vmatprep.mubr.bf16.mxu0 0
    %1165 = vmatmul.mubr.bf16.gmra.mrb[0].mxu0 %v779
    %v1166 = vpop.f32.mrb[0].mxu0
    %v1167 = vadd.f32 %v510, %v1166
    %v1168 = vpop.f32.mrb[0].mxu0
    %v1169 = vadd.f32 %v510, %v1168
    %v1170 = vpop.f32.mrb[0].mxu0
    %v1171 = vadd.f32 %v515, %v1170
    %v1172 = vpop.f32.mrb[0].mxu0
    %v1173 = vadd.f32 %v515, %v1172
    %1174 = vmatprep.mubr.bf16.mxu0 0
    %1175 = vmatmul.mubr.bf16.gmra.mrb[0].mxu0 %v782
    %v1176 = vpop.f32.mrb[0].mxu0
    %v1177 = vadd.f32 %v520, %v1176
    %v1178 = vpop.f32.mrb[0].mxu0
    %v1179 = vadd.f32 %v520, %v1178
    %v1180 = vpop.f32.mrb[0].mxu0
    %v1181 = vadd.f32 %v525, %v1180
    %v1182 = vpop.f32.mrb[0].mxu0
    %v1183 = vadd.f32 %v525, %v1182
    %1184 = vdwg.mxu0
    %v1185 = vpack.c.bf16 %v871, %v867
    %v1186 = vpack.c.bf16 %v873, %v869
    %v1187 = vpack.c.bf16 %v881, %v877
    %v1188 = vpack.c.bf16 %v883, %v879
    %v1189 = vpack.c.bf16 %v891, %v887
    %v1190 = vpack.c.bf16 %v893, %v889
    %v1191 = vpack.c.bf16 %v901, %v897
    %v1192 = vpack.c.bf16 %v903, %v899
    %v1193 = vpack.c.bf16 %v911, %v907
    %v1194 = vpack.c.bf16 %v913, %v909
    %v1195 = vpack.c.bf16 %v921, %v917
    %v1196 = vpack.c.bf16 %v923, %v919
    %v1197 = vpack.c.bf16 %v931, %v927
    %v1198 = vpack.c.bf16 %v933, %v929
    %v1199 = vpack.c.bf16 %v941, %v937
    %v1200 = vpack.c.bf16 %v943, %v939
    %v1201 = vpack.c.bf16 %v951, %v947
    %v1202 = vpack.c.bf16 %v953, %v949
    %v1203 = vpack.c.bf16 %v961, %v957
    %v1204 = vpack.c.bf16 %v963, %v959
    %v1205 = vpack.c.bf16 %v971, %v967
    %v1206 = vpack.c.bf16 %v973, %v969
    %v1207 = vpack.c.bf16 %v981, %v977
    %v1208 = vpack.c.bf16 %v983, %v979
    %v1209 = vpack.c.bf16 %v991, %v987
    %v1210 = vpack.c.bf16 %v993, %v989
    %v1211 = vpack.c.bf16 %v1001, %v997
    %v1212 = vpack.c.bf16 %v1003, %v999
    %v1213 = vpack.c.bf16 %v1011, %v1007
    %v1214 = vpack.c.bf16 %v1013, %v1009
    %v1215 = vpack.c.bf16 %v1021, %v1017
    %v1216 = vpack.c.bf16 %v1023, %v1019
    %v1217 = vpack.c.bf16 %v1031, %v1027
    %v1218 = vpack.c.bf16 %v1033, %v1029
    %v1219 = vpack.c.bf16 %v1041, %v1037
    %v1220 = vpack.c.bf16 %v1043, %v1039
    %v1221 = vpack.c.bf16 %v1051, %v1047
    %v1222 = vpack.c.bf16 %v1053, %v1049
    %v1223 = vpack.c.bf16 %v1061, %v1057
    %v1224 = vpack.c.bf16 %v1063, %v1059
    %v1225 = vpack.c.bf16 %v1071, %v1067
    %v1226 = vpack.c.bf16 %v1073, %v1069
    %v1227 = vpack.c.bf16 %v1081, %v1077
    %v1228 = vpack.c.bf16 %v1083, %v1079
    %v1229 = vpack.c.bf16 %v1091, %v1087
    %v1230 = vpack.c.bf16 %v1093, %v1089
    %v1231 = vpack.c.bf16 %v1101, %v1097
    %v1232 = vpack.c.bf16 %v1103, %v1099
    %v1233 = vpack.c.bf16 %v1111, %v1107
    %v1234 = vpack.c.bf16 %v1113, %v1109
    %v1235 = vpack.c.bf16 %v1121, %v1117
    %v1236 = vpack.c.bf16 %v1123, %v1119
    %v1237 = vpack.c.bf16 %v1131, %v1127
    %v1238 = vpack.c.bf16 %v1133, %v1129
    %v1239 = vpack.c.bf16 %v1141, %v1137
    %v1240 = vpack.c.bf16 %v1143, %v1139
    %v1241 = vpack.c.bf16 %v1151, %v1147
    %v1242 = vpack.c.bf16 %v1153, %v1149
    %v1243 = vpack.c.bf16 %v1161, %v1157
    %v1244 = vpack.c.bf16 %v1163, %v1159
    %v1245 = vpack.c.bf16 %v1171, %v1167
    %v1246 = vpack.c.bf16 %v1173, %v1169
    %v1247 = vpack.c.bf16 %v1181, %v1177
    %v1248 = vpack.c.bf16 %v1183, %v1179
    %v1249 = vmul.bf16 %v1185, 1045249613
    %v1250 = vmul.bf16 %v1186, 1045249613
    %v1251 = vmul.bf16 %v1187, 1045249613
    %v1252 = vmul.bf16 %v1188, 1045249613
    %v1253 = vmul.bf16 %v1189, 1045249613
    %v1254 = vmul.bf16 %v1190, 1045249613
    %v1255 = vmul.bf16 %v1191, 1045249613
    %v1256 = vmul.bf16 %v1192, 1045249613
    %v1257 = vmul.bf16 %v1193, 1045249613
    %v1258 = vmul.bf16 %v1194, 1045249613
    %v1259 = vmul.bf16 %v1195, 1045249613
    %v1260 = vmul.bf16 %v1196, 1045249613
    %v1261 = vmul.bf16 %v1197, 1045249613
    %v1262 = vmul.bf16 %v1198, 1045249613
    %v1263 = vmul.bf16 %v1199, 1045249613
    %v1264 = vmul.bf16 %v1200, 1045249613
    %v1265 = vmul.bf16 %v1201, 1045249613
    %v1266 = vmul.bf16 %v1202, 1045249613
    %v1267 = vmul.bf16 %v1203, 1045249613
    %v1268 = vmul.bf16 %v1204, 1045249613
    %v1269 = vmul.bf16 %v1205, 1045249613
    %v1270 = vmul.bf16 %v1206, 1045249613
    %v1271 = vmul.bf16 %v1207, 1045249613
    %v1272 = vmul.bf16 %v1208, 1045249613
    %v1273 = vmul.bf16 %v1209, 1045249613
    %v1274 = vmul.bf16 %v1210, 1045249613
    %v1275 = vmul.bf16 %v1211, 1045249613
    %v1276 = vmul.bf16 %v1212, 1045249613
    %v1277 = vmul.bf16 %v1213, 1045249613
    %v1278 = vmul.bf16 %v1214, 1045249613
    %v1279 = vmul.bf16 %v1215, 1045249613
    %v1280 = vmul.bf16 %v1216, 1045249613
    %v1281 = vmul.bf16 %v1217, 1045249613
    %v1282 = vmul.bf16 %v1218, 1045249613
    %v1283 = vmul.bf16 %v1219, 1045249613
    %v1284 = vmul.bf16 %v1220, 1045249613
    %v1285 = vmul.bf16 %v1221, 1045249613
    %v1286 = vmul.bf16 %v1222, 1045249613
    %v1287 = vmul.bf16 %v1223, 1045249613
    %v1288 = vmul.bf16 %v1224, 1045249613
    %v1289 = vmul.bf16 %v1225, 1045249613
    %v1290 = vmul.bf16 %v1226, 1045249613
    %v1291 = vmul.bf16 %v1227, 1045249613
    %v1292 = vmul.bf16 %v1228, 1045249613
    %v1293 = vmul.bf16 %v1229, 1045249613
    %v1294 = vmul.bf16 %v1230, 1045249613
    %v1295 = vmul.bf16 %v1231, 1045249613
    %v1296 = vmul.bf16 %v1232, 1045249613
    %v1297 = vmul.bf16 %v1233, 1045249613
    %v1298 = vmul.bf16 %v1234, 1045249613
    %v1299 = vmul.bf16 %v1235, 1045249613
    %v1300 = vmul.bf16 %v1236, 1045249613
    %v1301 = vmul.bf16 %v1237, 1045249613
    %v1302 = vmul.bf16 %v1238, 1045249613
    %v1303 = vmul.bf16 %v1239, 1045249613
    %v1304 = vmul.bf16 %v1240, 1045249613
    %v1305 = vmul.bf16 %v1241, 1045249613
    %v1306 = vmul.bf16 %v1242, 1045249613
    %v1307 = vmul.bf16 %v1243, 1045249613
    %v1308 = vmul.bf16 %v1244, 1045249613
    %v1309 = vmul.bf16 %v1245, 1045249613
    %v1310 = vmul.bf16 %v1246, 1045249613
    %v1311 = vmul.bf16 %v1247, 1045249613
    %v1312 = vmul.bf16 %v1248, 1045249613
    %v1313 = vmax.bf16 %v1185, %v1249
    %v1314 = vmax.bf16 %v1186, %v1250
    %v1315 = vmax.bf16 %v1187, %v1251
    %v1316 = vmax.bf16 %v1188, %v1252
    %v1317 = vmax.bf16 %v1189, %v1253
    %v1318 = vmax.bf16 %v1190, %v1254
    %v1319 = vmax.bf16 %v1191, %v1255
    %v1320 = vmax.bf16 %v1192, %v1256
    %v1321 = vmax.bf16 %v1193, %v1257
    %v1322 = vmax.bf16 %v1194, %v1258
    %v1323 = vmax.bf16 %v1195, %v1259
    %v1324 = vmax.bf16 %v1196, %v1260
    %v1325 = vmax.bf16 %v1197, %v1261
    %v1326 = vmax.bf16 %v1198, %v1262
    %v1327 = vmax.bf16 %v1199, %v1263
    %v1328 = vmax.bf16 %v1200, %v1264
    %v1329 = vmax.bf16 %v1201, %v1265
    %v1330 = vmax.bf16 %v1202, %v1266
    %v1331 = vmax.bf16 %v1203, %v1267
    %v1332 = vmax.bf16 %v1204, %v1268
    %v1333 = vmax.bf16 %v1205, %v1269
    %v1334 = vmax.bf16 %v1206, %v1270
    %v1335 = vmax.bf16 %v1207, %v1271
    %v1336 = vmax.bf16 %v1208, %v1272
    %v1337 = vmax.bf16 %v1209, %v1273
    %v1338 = vmax.bf16 %v1210, %v1274
    %v1339 = vmax.bf16 %v1211, %v1275
    %v1340 = vmax.bf16 %v1212, %v1276
    %v1341 = vmax.bf16 %v1213, %v1277
    %v1342 = vmax.bf16 %v1214, %v1278
    %v1343 = vmax.bf16 %v1215, %v1279
    %v1344 = vmax.bf16 %v1216, %v1280
    %v1345 = vmax.bf16 %v1217, %v1281
    %v1346 = vmax.bf16 %v1218, %v1282
    %v1347 = vmax.bf16 %v1219, %v1283
    %v1348 = vmax.bf16 %v1220, %v1284
    %v1349 = vmax.bf16 %v1221, %v1285
    %v1350 = vmax.bf16 %v1222, %v1286
    %v1351 = vmax.bf16 %v1223, %v1287
    %v1352 = vmax.bf16 %v1224, %v1288
    %v1353 = vmax.bf16 %v1225, %v1289
    %v1354 = vmax.bf16 %v1226, %v1290
    %v1355 = vmax.bf16 %v1227, %v1291
    %v1356 = vmax.bf16 %v1228, %v1292
    %v1357 = vmax.bf16 %v1229, %v1293
    %v1358 = vmax.bf16 %v1230, %v1294
    %v1359 = vmax.bf16 %v1231, %v1295
    %v1360 = vmax.bf16 %v1232, %v1296
    %v1361 = vmax.bf16 %v1233, %v1297
    %v1362 = vmax.bf16 %v1234, %v1298
    %v1363 = vmax.bf16 %v1235, %v1299
    %v1364 = vmax.bf16 %v1236, %v1300
    %v1365 = vmax.bf16 %v1237, %v1301
    %v1366 = vmax.bf16 %v1238, %v1302
    %v1367 = vmax.bf16 %v1239, %v1303
    %v1368 = vmax.bf16 %v1240, %v1304
    %v1369 = vmax.bf16 %v1241, %v1305
    %v1370 = vmax.bf16 %v1242, %v1306
    %v1371 = vmax.bf16 %v1243, %v1307
    %v1372 = vmax.bf16 %v1244, %v1308
    %v1373 = vmax.bf16 %v1245, %v1309
    %v1374 = vmax.bf16 %v1246, %v1310
    %v1375 = vmax.bf16 %v1247, %v1311
    %v1376 = vmax.bf16 %v1248, %v1312
    %v1377 = vld [vmem:[%s3] sm:$0xff]
    %v1378 = vld [vmem:[%s3 + $0x8] sm:$0xff]
    %v1379 = vld [vmem:[%s3 + $0x10] sm:$0xff]
    %v1380 = vld [vmem:[%s3 + $0x18] sm:$0xff]
    %v1381 = vld [vmem:[%s3 + $0x20] sm:$0xff]
    %v1382 = vld [vmem:[%s3 + $0x28] sm:$0xff]
    %v1383 = vld [vmem:[%s3 + $0x30] sm:$0xff]
    %v1384 = vld [vmem:[%s3 + $0x38] sm:$0xff]
    %v1385 = vld [vmem:[%s3 + $0x40] sm:$0xff]
    %v1386 = vld [vmem:[%s3 + $0x48] sm:$0xff]
    %v1387 = vld [vmem:[%s3 + $0x50] sm:$0xff]
    %v1388 = vld [vmem:[%s3 + $0x58] sm:$0xff]
    %v1389 = vld [vmem:[%s3 + $0x60] sm:$0xff]
    %v1390 = vld [vmem:[%s3 + $0x68] sm:$0xff]
    %v1391 = vld [vmem:[%s3 + $0x70] sm:$0xff]
    %v1392 = vld [vmem:[%s3 + $0x78] sm:$0xff]
    %v1393 = vld [vmem:[%s3 + $0x80] sm:$0xff]
    %v1394 = vld [vmem:[%s3 + $0x88] sm:$0xff]
    %v1395 = vld [vmem:[%s3 + $0x90] sm:$0xff]
    %v1396 = vld [vmem:[%s3 + $0x98] sm:$0xff]
    %v1397 = vld [vmem:[%s3 + $0xa0] sm:$0xff]
    %v1398 = vld [vmem:[%s3 + $0xa8] sm:$0xff]
    %v1399 = vld [vmem:[%s3 + $0xb0] sm:$0xff]
    %v1400 = vld [vmem:[%s3 + $0xb8] sm:$0xff]
    %v1401 = vld [vmem:[%s3 + $0xc0] sm:$0xff]
    %v1402 = vld [vmem:[%s3 + $0xc8] sm:$0xff]
    %v1403 = vld [vmem:[%s3 + $0xd0] sm:$0xff]
    %v1404 = vld [vmem:[%s3 + $0xd8] sm:$0xff]
    %v1405 = vld [vmem:[%s3 + $0xe0] sm:$0xff]
    %v1406 = vld [vmem:[%s3 + $0xe8] sm:$0xff]
    %v1407 = vld [vmem:[%s3 + $0xf0] sm:$0xff]
    %v1408 = vld [vmem:[%s3 + $0xf8] sm:$0xff]
    %v1409 = vld [vmem:[%s3 + $0x100] sm:$0xff]
    %v1410 = vld [vmem:[%s3 + $0x108] sm:$0xff]
    %v1411 = vld [vmem:[%s3 + $0x110] sm:$0xff]
    %v1412 = vld [vmem:[%s3 + $0x118] sm:$0xff]
    %v1413 = vld [vmem:[%s3 + $0x120] sm:$0xff]
    %v1414 = vld [vmem:[%s3 + $0x128] sm:$0xff]
    %v1415 = vld [vmem:[%s3 + $0x130] sm:$0xff]
    %v1416 = vld [vmem:[%s3 + $0x138] sm:$0xff]
    %v1417 = vld [vmem:[%s3 + $0x140] sm:$0xff]
    %v1418 = vld [vmem:[%s3 + $0x148] sm:$0xff]
    %v1419 = vld [vmem:[%s3 + $0x150] sm:$0xff]
    %v1420 = vld [vmem:[%s3 + $0x158] sm:$0xff]
    %v1421 = vld [vmem:[%s3 + $0x160] sm:$0xff]
    %v1422 = vld [vmem:[%s3 + $0x168] sm:$0xff]
    %v1423 = vld [vmem:[%s3 + $0x170] sm:$0xff]
    %v1424 = vld [vmem:[%s3 + $0x178] sm:$0xff]
    %v1425 = vld [vmem:[%s3 + $0x180] sm:$0xff]
    %v1426 = vld [vmem:[%s3 + $0x188] sm:$0xff]
    %v1427 = vld [vmem:[%s3 + $0x190] sm:$0xff]
    %v1428 = vld [vmem:[%s3 + $0x198] sm:$0xff]
    %v1429 = vld [vmem:[%s3 + $0x1a0] sm:$0xff]
    %v1430 = vld [vmem:[%s3 + $0x1a8] sm:$0xff]
    %v1431 = vld [vmem:[%s3 + $0x1b0] sm:$0xff]
    %v1432 = vld [vmem:[%s3 + $0x1b8] sm:$0xff]
    %v1433 = vld [vmem:[%s3 + $0x1c0] sm:$0xff]
    %v1434 = vld [vmem:[%s3 + $0x1c8] sm:$0xff]
    %v1435 = vld [vmem:[%s3 + $0x1d0] sm:$0xff]
    %v1436 = vld [vmem:[%s3 + $0x1d8] sm:$0xff]
    %v1437 = vld [vmem:[%s3 + $0x1e0] sm:$0xff]
    %v1438 = vld [vmem:[%s3 + $0x1e8] sm:$0xff]
    %v1439 = vld [vmem:[%s3 + $0x1f0] sm:$0xff]
    %v1440 = vld [vmem:[%s3 + $0x1f8] sm:$0xff]
    %v1441 = vld [vmem:[%s4] sm:$0xff]
    %v1442 = vld [vmem:[%s4 + $0x8] sm:$0xff]
    %v1443 = vld [vmem:[%s4 + $0x10] sm:$0xff]
    %v1444 = vld [vmem:[%s4 + $0x18] sm:$0xff]
    %v1445 = vld [vmem:[%s4 + $0x20] sm:$0xff]
    %v1446 = vld [vmem:[%s4 + $0x28] sm:$0xff]
    %v1447 = vld [vmem:[%s4 + $0x30] sm:$0xff]
    %v1448 = vld [vmem:[%s4 + $0x38] sm:$0xff]
    %v1449 = vld [vmem:[%s4 + $0x40] sm:$0xff]
    %v1450 = vld [vmem:[%s4 + $0x48] sm:$0xff]
    %v1451 = vld [vmem:[%s4 + $0x50] sm:$0xff]
    %v1452 = vld [vmem:[%s4 + $0x58] sm:$0xff]
    %v1453 = vld [vmem:[%s4 + $0x60] sm:$0xff]
    %v1454 = vld [vmem:[%s4 + $0x68] sm:$0xff]
    %v1455 = vld [vmem:[%s4 + $0x70] sm:$0xff]
    %v1456 = vld [vmem:[%s4 + $0x78] sm:$0xff]
    %v1457 = vld [vmem:[%s4 + $0x80] sm:$0xff]
    %v1458 = vld [vmem:[%s4 + $0x88] sm:$0xff]
    %v1459 = vld [vmem:[%s4 + $0x90] sm:$0xff]
    %v1460 = vld [vmem:[%s4 + $0x98] sm:$0xff]
    %v1461 = vld [vmem:[%s4 + $0xa0] sm:$0xff]
    %v1462 = vld [vmem:[%s4 + $0xa8] sm:$0xff]
    %v1463 = vld [vmem:[%s4 + $0xb0] sm:$0xff]
    %v1464 = vld [vmem:[%s4 + $0xb8] sm:$0xff]
    %v1465 = vld [vmem:[%s4 + $0xc0] sm:$0xff]
    %v1466 = vld [vmem:[%s4 + $0xc8] sm:$0xff]
    %v1467 = vld [vmem:[%s4 + $0xd0] sm:$0xff]
    %v1468 = vld [vmem:[%s4 + $0xd8] sm:$0xff]
    %v1469 = vld [vmem:[%s4 + $0xe0] sm:$0xff]
    %v1470 = vld [vmem:[%s4 + $0xe8] sm:$0xff]
    %v1471 = vld [vmem:[%s4 + $0xf0] sm:$0xff]
    %v1472 = vld [vmem:[%s4 + $0xf8] sm:$0xff]
    %1474 = vset.pattern.permute.xlu0 0
    %1475 = vperm.xlu0 %1474, %v1441
    %v1476 = vpop.permute.xlu0 %1475
    %1479 = vset.pattern.permute.xlu0 0
    %1480 = vperm.xlu0 %1479, %v1442
    %v1481 = vpop.permute.xlu0 %1480
    %1484 = vset.pattern.permute.xlu0 0
    %1485 = vperm.xlu0 %1484, %v1443
    %v1486 = vpop.permute.xlu0 %1485
    %1489 = vset.pattern.permute.xlu0 0
    %1490 = vperm.xlu0 %1489, %v1444
    %v1491 = vpop.permute.xlu0 %1490
    %1494 = vset.pattern.permute.xlu0 0
    %1495 = vperm.xlu0 %1494, %v1445
    %v1496 = vpop.permute.xlu0 %1495
    %1499 = vset.pattern.permute.xlu0 0
    %1500 = vperm.xlu0 %1499, %v1446
    %v1501 = vpop.permute.xlu0 %1500
    %1504 = vset.pattern.permute.xlu0 0
    %1505 = vperm.xlu0 %1504, %v1447
    %v1506 = vpop.permute.xlu0 %1505
    %1509 = vset.pattern.permute.xlu0 0
    %1510 = vperm.xlu0 %1509, %v1448
    %v1511 = vpop.permute.xlu0 %1510
    %1514 = vset.pattern.permute.xlu0 0
    %1515 = vperm.xlu0 %1514, %v1449
    %v1516 = vpop.permute.xlu0 %1515
    %1519 = vset.pattern.permute.xlu0 0
    %1520 = vperm.xlu0 %1519, %v1450
    %v1521 = vpop.permute.xlu0 %1520
    %1524 = vset.pattern.permute.xlu0 0
    %1525 = vperm.xlu0 %1524, %v1451
    %v1526 = vpop.permute.xlu0 %1525
    %1529 = vset.pattern.permute.xlu0 0
    %1530 = vperm.xlu0 %1529, %v1452
    %v1531 = vpop.permute.xlu0 %1530
    %1534 = vset.pattern.permute.xlu0 0
    %1535 = vperm.xlu0 %1534, %v1453
    %v1536 = vpop.permute.xlu0 %1535
    %1539 = vset.pattern.permute.xlu0 0
    %1540 = vperm.xlu0 %1539, %v1454
    %v1541 = vpop.permute.xlu0 %1540
    %1544 = vset.pattern.permute.xlu0 0
    %1545 = vperm.xlu0 %1544, %v1455
    %v1546 = vpop.permute.xlu0 %1545
    %1549 = vset.pattern.permute.xlu0 0
    %1550 = vperm.xlu0 %1549, %v1456
    %v1551 = vpop.permute.xlu0 %1550
    %1554 = vset.pattern.permute.xlu0 0
    %1555 = vperm.xlu0 %1554, %v1457
    %v1556 = vpop.permute.xlu0 %1555
    %1559 = vset.pattern.permute.xlu0 0
    %1560 = vperm.xlu0 %1559, %v1458
    %v1561 = vpop.permute.xlu0 %1560
    %1564 = vset.pattern.permute.xlu0 0
    %1565 = vperm.xlu0 %1564, %v1459
    %v1566 = vpop.permute.xlu0 %1565
    %1569 = vset.pattern.permute.xlu0 0
    %1570 = vperm.xlu0 %1569, %v1460
    %v1571 = vpop.permute.xlu0 %1570
    %1574 = vset.pattern.permute.xlu0 0
    %1575 = vperm.xlu0 %1574, %v1461
    %v1576 = vpop.permute.xlu0 %1575
    %1579 = vset.pattern.permute.xlu0 0
    %1580 = vperm.xlu0 %1579, %v1462
    %v1581 = vpop.permute.xlu0 %1580
    %1584 = vset.pattern.permute.xlu0 0
    %1585 = vperm.xlu0 %1584, %v1463
    %v1586 = vpop.permute.xlu0 %1585
    %1589 = vset.pattern.permute.xlu0 0
    %1590 = vperm.xlu0 %1589, %v1464
    %v1591 = vpop.permute.xlu0 %1590
    %1594 = vset.pattern.permute.xlu0 0
    %1595 = vperm.xlu0 %1594, %v1465
    %v1596 = vpop.permute.xlu0 %1595
    %1599 = vset.pattern.permute.xlu0 0
    %1600 = vperm.xlu0 %1599, %v1466
    %v1601 = vpop.permute.xlu0 %1600
    %1604 = vset.pattern.permute.xlu0 0
    %1605 = vperm.xlu0 %1604, %v1467
    %v1606 = vpop.permute.xlu0 %1605
    %1609 = vset.pattern.permute.xlu0 0
    %1610 = vperm.xlu0 %1609, %v1468
    %v1611 = vpop.permute.xlu0 %1610
    %1614 = vset.pattern.permute.xlu0 0
    %1615 = vperm.xlu0 %1614, %v1469
    %v1616 = vpop.permute.xlu0 %1615
    %1619 = vset.pattern.permute.xlu0 0
    %1620 = vperm.xlu0 %1619, %v1470
    %v1621 = vpop.permute.xlu0 %1620
    %1624 = vset.pattern.permute.xlu0 0
    %1625 = vperm.xlu0 %1624, %v1471
    %v1626 = vpop.permute.xlu0 %1625
    %1629 = vset.pattern.permute.xlu0 0
    %1630 = vperm.xlu0 %1629, %v1472
    %v1631 = vpop.permute.xlu0 %1630
    %v1697 = vunpack.c.l.b16 %v1377
    %v1698 = vunpack.c.h.b16 %v1377
    %v1699 = vunpack.c.l.b16 %v1378
    %v1700 = vunpack.c.h.b16 %v1378
    %v1701 = vunpack.c.l.b16 %v1379
    %v1702 = vunpack.c.h.b16 %v1379
    %v1703 = vunpack.c.l.b16 %v1380
    %v1704 = vunpack.c.h.b16 %v1380
    %v1705 = vunpack.c.l.b16 %v1381
    %v1706 = vunpack.c.h.b16 %v1381
    %v1707 = vunpack.c.l.b16 %v1382
    %v1708 = vunpack.c.h.b16 %v1382
    %v1709 = vunpack.c.l.b16 %v1383
    %v1710 = vunpack.c.h.b16 %v1383
    %v1711 = vunpack.c.l.b16 %v1384
    %v1712 = vunpack.c.h.b16 %v1384
    %v1713 = vunpack.c.l.b16 %v1385
    %v1714 = vunpack.c.h.b16 %v1385
    %v1715 = vunpack.c.l.b16 %v1386
    %v1716 = vunpack.c.h.b16 %v1386
    %v1717 = vunpack.c.l.b16 %v1387
    %v1718 = vunpack.c.h.b16 %v1387
    %v1719 = vunpack.c.l.b16 %v1388
    %v1720 = vunpack.c.h.b16 %v1388
    %v1721 = vunpack.c.l.b16 %v1389
    %v1722 = vunpack.c.h.b16 %v1389
    %v1723 = vunpack.c.l.b16 %v1390
    %v1724 = vunpack.c.h.b16 %v1390
    %v1725 = vunpack.c.l.b16 %v1391
    %v1726 = vunpack.c.h.b16 %v1391
    %v1727 = vunpack.c.l.b16 %v1392
    %v1728 = vunpack.c.h.b16 %v1392
    %v1729 = vunpack.c.l.b16 %v1393
    %v1730 = vunpack.c.h.b16 %v1393
    %v1731 = vunpack.c.l.b16 %v1394
    %v1732 = vunpack.c.h.b16 %v1394
    %v1733 = vunpack.c.l.b16 %v1395
    %v1734 = vunpack.c.h.b16 %v1395
    %v1735 = vunpack.c.l.b16 %v1396
    %v1736 = vunpack.c.h.b16 %v1396
    %v1737 = vunpack.c.l.b16 %v1397
    %v1738 = vunpack.c.h.b16 %v1397
    %v1739 = vunpack.c.l.b16 %v1398
    %v1740 = vunpack.c.h.b16 %v1398
    %v1741 = vunpack.c.l.b16 %v1399
    %v1742 = vunpack.c.h.b16 %v1399
    %v1743 = vunpack.c.l.b16 %v1400
    %v1744 = vunpack.c.h.b16 %v1400
    %v1745 = vunpack.c.l.b16 %v1401
    %v1746 = vunpack.c.h.b16 %v1401
    %v1747 = vunpack.c.l.b16 %v1402
    %v1748 = vunpack.c.h.b16 %v1402
    %v1749 = vunpack.c.l.b16 %v1403
    %v1750 = vunpack.c.h.b16 %v1403
    %v1751 = vunpack.c.l.b16 %v1404
    %v1752 = vunpack.c.h.b16 %v1404
    %v1753 = vunpack.c.l.b16 %v1405
    %v1754 = vunpack.c.h.b16 %v1405
    %v1755 = vunpack.c.l.b16 %v1406
    %v1756 = vunpack.c.h.b16 %v1406
    %v1757 = vunpack.c.l.b16 %v1407
    %v1758 = vunpack.c.h.b16 %v1407
    %v1759 = vunpack.c.l.b16 %v1408
    %v1760 = vunpack.c.h.b16 %v1408
    %v1761 = vunpack.c.l.b16 %v1409
    %v1762 = vunpack.c.h.b16 %v1409
    %v1763 = vunpack.c.l.b16 %v1410
    %v1764 = vunpack.c.h.b16 %v1410
    %v1765 = vunpack.c.l.b16 %v1411
    %v1766 = vunpack.c.h.b16 %v1411
    %v1767 = vunpack.c.l.b16 %v1412
    %v1768 = vunpack.c.h.b16 %v1412
    %v1769 = vunpack.c.l.b16 %v1413
    %v1770 = vunpack.c.h.b16 %v1413
    %v1771 = vunpack.c.l.b16 %v1414
    %v1772 = vunpack.c.h.b16 %v1414
    %v1773 = vunpack.c.l.b16 %v1415
    %v1774 = vunpack.c.h.b16 %v1415
    %v1775 = vunpack.c.l.b16 %v1416
    %v1776 = vunpack.c.h.b16 %v1416
    %v1777 = vunpack.c.l.b16 %v1417
    %v1778 = vunpack.c.h.b16 %v1417
    %v1779 = vunpack.c.l.b16 %v1418
    %v1780 = vunpack.c.h.b16 %v1418
    %v1781 = vunpack.c.l.b16 %v1419
    %v1782 = vunpack.c.h.b16 %v1419
    %v1783 = vunpack.c.l.b16 %v1420
    %v1784 = vunpack.c.h.b16 %v1420
    %v1785 = vunpack.c.l.b16 %v1421
    %v1786 = vunpack.c.h.b16 %v1421
    %v1787 = vunpack.c.l.b16 %v1422
    %v1788 = vunpack.c.h.b16 %v1422
    %v1789 = vunpack.c.l.b16 %v1423
    %v1790 = vunpack.c.h.b16 %v1423
    %v1791 = vunpack.c.l.b16 %v1424
    %v1792 = vunpack.c.h.b16 %v1424
    %v1793 = vunpack.c.l.b16 %v1425
    %v1794 = vunpack.c.h.b16 %v1425
    %v1795 = vunpack.c.l.b16 %v1426
    %v1796 = vunpack.c.h.b16 %v1426
    %v1797 = vunpack.c.l.b16 %v1427
    %v1798 = vunpack.c.h.b16 %v1427
    %v1799 = vunpack.c.l.b16 %v1428
    %v1800 = vunpack.c.h.b16 %v1428
    %v1801 = vunpack.c.l.b16 %v1429
    %v1802 = vunpack.c.h.b16 %v1429
    %v1803 = vunpack.c.l.b16 %v1430
    %v1804 = vunpack.c.h.b16 %v1430
    %v1805 = vunpack.c.l.b16 %v1431
    %v1806 = vunpack.c.h.b16 %v1431
    %v1807 = vunpack.c.l.b16 %v1432
    %v1808 = vunpack.c.h.b16 %v1432
    %v1809 = vunpack.c.l.b16 %v1433
    %v1810 = vunpack.c.h.b16 %v1433
    %v1811 = vunpack.c.l.b16 %v1434
    %v1812 = vunpack.c.h.b16 %v1434
    %v1813 = vunpack.c.l.b16 %v1435
    %v1814 = vunpack.c.h.b16 %v1435
    %v1815 = vunpack.c.l.b16 %v1436
    %v1816 = vunpack.c.h.b16 %v1436
    %v1817 = vunpack.c.l.b16 %v1437
    %v1818 = vunpack.c.h.b16 %v1437
    %v1819 = vunpack.c.l.b16 %v1438
    %v1820 = vunpack.c.h.b16 %v1438
    %v1821 = vunpack.c.l.b16 %v1439
    %v1822 = vunpack.c.h.b16 %v1439
    %v1823 = vunpack.c.l.b16 %v1440
    %v1824 = vunpack.c.h.b16 %v1440
    %v1825 = vpack.c.b16 %v1701, %v1697
    %v1826 = vpack.c.b16 %v1702, %v1698
    %v1827 = vpack.c.b16 %v1703, %v1699
    %v1828 = vpack.c.b16 %v1704, %v1700
    %v1829 = vpack.c.b16 %v1709, %v1705
    %v1830 = vpack.c.b16 %v1710, %v1706
    %v1831 = vpack.c.b16 %v1711, %v1707
    %v1832 = vpack.c.b16 %v1712, %v1708
    %v1833 = vpack.c.b16 %v1717, %v1713
    %v1834 = vpack.c.b16 %v1718, %v1714
    %v1835 = vpack.c.b16 %v1719, %v1715
    %v1836 = vpack.c.b16 %v1720, %v1716
    %v1837 = vpack.c.b16 %v1725, %v1721
    %v1838 = vpack.c.b16 %v1726, %v1722
    %v1839 = vpack.c.b16 %v1727, %v1723
    %v1840 = vpack.c.b16 %v1728, %v1724
    %v1841 = vpack.c.b16 %v1733, %v1729
    %v1842 = vpack.c.b16 %v1734, %v1730
    %v1843 = vpack.c.b16 %v1735, %v1731
    %v1844 = vpack.c.b16 %v1736, %v1732
    %v1845 = vpack.c.b16 %v1741, %v1737
    %v1846 = vpack.c.b16 %v1742, %v1738
    %v1847 = vpack.c.b16 %v1743, %v1739
    %v1848 = vpack.c.b16 %v1744, %v1740
    %v1849 = vpack.c.b16 %v1749, %v1745
    %v1850 = vpack.c.b16 %v1750, %v1746
    %v1851 = vpack.c.b16 %v1751, %v1747
    %v1852 = vpack.c.b16 %v1752, %v1748
    %v1853 = vpack.c.b16 %v1757, %v1753
    %v1854 = vpack.c.b16 %v1758, %v1754
    %v1855 = vpack.c.b16 %v1759, %v1755
    %v1856 = vpack.c.b16 %v1760, %v1756
    %v1857 = vpack.c.b16 %v1765, %v1761
    %v1858 = vpack.c.b16 %v1766, %v1762
    %v1859 = vpack.c.b16 %v1767, %v1763
    %v1860 = vpack.c.b16 %v1768, %v1764
    %v1861 = vpack.c.b16 %v1773, %v1769
    %v1862 = vpack.c.b16 %v1774, %v1770
    %v1863 = vpack.c.b16 %v1775, %v1771
    %v1864 = vpack.c.b16 %v1776, %v1772
    %v1865 = vpack.c.b16 %v1781, %v1777
    %v1866 = vpack.c.b16 %v1782, %v1778
    %v1867 = vpack.c.b16 %v1783, %v1779
    %v1868 = vpack.c.b16 %v1784, %v1780
    %v1869 = vpack.c.b16 %v1789, %v1785
    %v1870 = vpack.c.b16 %v1790, %v1786
    %v1871 = vpack.c.b16 %v1791, %v1787
    %v1872 = vpack.c.b16 %v1792, %v1788
    %v1873 = vpack.c.b16 %v1797, %v1793
    %v1874 = vpack.c.b16 %v1798, %v1794
    %v1875 = vpack.c.b16 %v1799, %v1795
    %v1876 = vpack.c.b16 %v1800, %v1796
    %v1877 = vpack.c.b16 %v1805, %v1801
    %v1878 = vpack.c.b16 %v1806, %v1802
    %v1879 = vpack.c.b16 %v1807, %v1803
    %v1880 = vpack.c.b16 %v1808, %v1804
    %v1881 = vpack.c.b16 %v1813, %v1809
    %v1882 = vpack.c.b16 %v1814, %v1810
    %v1883 = vpack.c.b16 %v1815, %v1811
    %v1884 = vpack.c.b16 %v1816, %v1812
    %v1885 = vpack.c.b16 %v1821, %v1817
    %v1886 = vpack.c.b16 %v1822, %v1818
    %v1887 = vpack.c.b16 %v1823, %v1819
    %v1888 = vpack.c.b16 %v1824, %v1820
    %1953 = vmatprep.subr.bf16.mxu0 %v1314
    %1954 = vmatpush1.bf16.msra.mxu0 %v1313
    %1955 = vmatprep.subr.bf16.mxu0 %v1316
    %1956 = vmatpush1.bf16.msra.mxu0 %v1315
    %1957 = vmatprep.subr.bf16.mxu0 %v1318
    %1958 = vmatpush1.bf16.msra.mxu0 %v1317
    %1959 = vmatprep.subr.bf16.mxu0 %v1320
    %1960 = vmatpush1.bf16.msra.mxu0 %v1319
    %1961 = vmatprep.subr.bf16.mxu0 %v1322
    %1962 = vmatpush1.bf16.msra.mxu0 %v1321
    %1963 = vmatprep.subr.bf16.mxu0 %v1324
    %1964 = vmatpush1.bf16.msra.mxu0 %v1323
    %1965 = vmatprep.subr.bf16.mxu0 %v1326
    %1966 = vmatpush1.bf16.msra.mxu0 %v1325
    %1967 = vmatprep.subr.bf16.mxu0 %v1328
    %1968 = vmatpush1.bf16.msra.mxu0 %v1327
    %1969 = vmatprep.subr.bf16.mxu0 %v1330
    %1970 = vmatpush1.bf16.msra.mxu0 %v1329
    %1971 = vmatprep.subr.bf16.mxu0 %v1332
    %1972 = vmatpush1.bf16.msra.mxu0 %v1331
    %1973 = vmatprep.subr.bf16.mxu0 %v1334
    %1974 = vmatpush1.bf16.msra.mxu0 %v1333
    %1975 = vmatprep.subr.bf16.mxu0 %v1336
    %1976 = vmatpush1.bf16.msra.mxu0 %v1335
    %1977 = vmatprep.subr.bf16.mxu0 %v1338
    %1978 = vmatpush1.bf16.msra.mxu0 %v1337
    %1979 = vmatprep.subr.bf16.mxu0 %v1340
    %1980 = vmatpush1.bf16.msra.mxu0 %v1339
    %1981 = vmatprep.subr.bf16.mxu0 %v1342
    %1982 = vmatpush1.bf16.msra.mxu0 %v1341
    %1983 = vmatprep.subr.bf16.mxu0 %v1344
    %1984 = vmatpush1.bf16.msra.mxu0 %v1343
    %1985 = vmatprep.mubr.bf16.mxu0 %v1826
    %1986 = vmatmul.mubr.bf16.gmra.mrb[0].mxu0 %v1825
    %v1987 = vpop.f32.mrb[0].mxu0
    %v1988 = vadd.f32 %v1476, %v1987
    %v1989 = vpop.f32.mrb[0].mxu0
    %v1990 = vadd.f32 %v1476, %v1989
    %v1991 = vpop.f32.mrb[0].mxu0
    %v1992 = vadd.f32 %v1481, %v1991
    %v1993 = vpop.f32.mrb[0].mxu0
    %v1994 = vadd.f32 %v1481, %v1993
    %1995 = vmatprep.mubr.bf16.mxu0 %v1830
    %1996 = vmatmul.mubr.bf16.gmra.mrb[0].mxu0 %v1829
    %v1997 = vpop.f32.mrb[0].mxu0
    %v1998 = vadd.f32 %v1486, %v1997
    %v1999 = vpop.f32.mrb[0].mxu0
    %v2000 = vadd.f32 %v1486, %v1999
    %v2001 = vpop.f32.mrb[0].mxu0
    %v2002 = vadd.f32 %v1491, %v2001
    %v2003 = vpop.f32.mrb[0].mxu0
    %v2004 = vadd.f32 %v1491, %v2003
    %2005 = vmatprep.mubr.bf16.mxu0 %v1834
    %2006 = vmatmul.mubr.bf16.gmra.mrb[0].mxu0 %v1833
    %v2007 = vpop.f32.mrb[0].mxu0
    %v2008 = vadd.f32 %v1496, %v2007
    %v2009 = vpop.f32.mrb[0].mxu0
    %v2010 = vadd.f32 %v1496, %v2009
    %v2011 = vpop.f32.mrb[0].mxu0
    %v2012 = vadd.f32 %v1501, %v2011
    %v2013 = vpop.f32.mrb[0].mxu0
    %v2014 = vadd.f32 %v1501, %v2013
    %2015 = vmatprep.mubr.bf16.mxu0 %v1838
    %2016 = vmatmul.mubr.bf16.gmra.mrb[0].mxu0 %v1837
    %v2017 = vpop.f32.mrb[0].mxu0
    %v2018 = vadd.f32 %v1506, %v2017
    %v2019 = vpop.f32.mrb[0].mxu0
    %v2020 = vadd.f32 %v1506, %v2019
    %v2021 = vpop.f32.mrb[0].mxu0
    %v2022 = vadd.f32 %v1511, %v2021
    %v2023 = vpop.f32.mrb[0].mxu0
    %v2024 = vadd.f32 %v1511, %v2023
    %2025 = vmatprep.mubr.bf16.mxu0 %v1842
    %2026 = vmatmul.mubr.bf16.gmra.mrb[0].mxu0 %v1841
    %v2027 = vpop.f32.mrb[0].mxu0
    %v2028 = vadd.f32 %v1516, %v2027
    %v2029 = vpop.f32.mrb[0].mxu0
    %v2030 = vadd.f32 %v1516, %v2029
    %v2031 = vpop.f32.mrb[0].mxu0
    %v2032 = vadd.f32 %v1521, %v2031
    %v2033 = vpop.f32.mrb[0].mxu0
    %v2034 = vadd.f32 %v1521, %v2033
    %2035 = vmatprep.mubr.bf16.mxu0 %v1846
    %2036 = vmatmul.mubr.bf16.gmra.mrb[0].mxu0 %v1845
    %v2037 = vpop.f32.mrb[0].mxu0
    %v2038 = vadd.f32 %v1526, %v2037
    %v2039 = vpop.f32.mrb[0].mxu0
    %v2040 = vadd.f32 %v1526, %v2039
    %v2041 = vpop.f32.mrb[0].mxu0
    %v2042 = vadd.f32 %v1531, %v2041
    %v2043 = vpop.f32.mrb[0].mxu0
    %v2044 = vadd.f32 %v1531, %v2043
    %2045 = vmatprep.mubr.bf16.mxu0 %v1850
    %2046 = vmatmul.mubr.bf16.gmra.mrb[0].mxu0 %v1849
    %v2047 = vpop.f32.mrb[0].mxu0
    %v2048 = vadd.f32 %v1536, %v2047
    %v2049 = vpop.f32.mrb[0].mxu0
    %v2050 = vadd.f32 %v1536, %v2049
    %v2051 = vpop.f32.mrb[0].mxu0
    %v2052 = vadd.f32 %v1541, %v2051
    %v2053 = vpop.f32.mrb[0].mxu0
    %v2054 = vadd.f32 %v1541, %v2053
    %2055 = vmatprep.mubr.bf16.mxu0 %v1854
    %2056 = vmatmul.mubr.bf16.gmra.mrb[0].mxu0 %v1853
    %v2057 = vpop.f32.mrb[0].mxu0
    %v2058 = vadd.f32 %v1546, %v2057
    %v2059 = vpop.f32.mrb[0].mxu0
    %v2060 = vadd.f32 %v1546, %v2059
    %v2061 = vpop.f32.mrb[0].mxu0
    %v2062 = vadd.f32 %v1551, %v2061
    %v2063 = vpop.f32.mrb[0].mxu0
    %v2064 = vadd.f32 %v1551, %v2063
    %2065 = vmatprep.mubr.bf16.mxu0 %v1858
    %2066 = vmatmul.mubr.bf16.gmra.mrb[0].mxu0 %v1857
    %v2067 = vpop.f32.mrb[0].mxu0
    %v2068 = vadd.f32 %v1556, %v2067
    %v2069 = vpop.f32.mrb[0].mxu0
    %v2070 = vadd.f32 %v1556, %v2069
    %v2071 = vpop.f32.mrb[0].mxu0
    %v2072 = vadd.f32 %v1561, %v2071
    %v2073 = vpop.f32.mrb[0].mxu0
    %v2074 = vadd.f32 %v1561, %v2073
    %2075 = vmatprep.mubr.bf16.mxu0 %v1862
    %2076 = vmatmul.mubr.bf16.gmra.mrb[0].mxu0 %v1861
    %v2077 = vpop.f32.mrb[0].mxu0
    %v2078 = vadd.f32 %v1566, %v2077
    %v2079 = vpop.f32.mrb[0].mxu0
    %v2080 = vadd.f32 %v1566, %v2079
    %v2081 = vpop.f32.mrb[0].mxu0
    %v2082 = vadd.f32 %v1571, %v2081
    %v2083 = vpop.f32.mrb[0].mxu0
    %v2084 = vadd.f32 %v1571, %v2083
    %2085 = vmatprep.mubr.bf16.mxu0 %v1866
    %2086 = vmatmul.mubr.bf16.gmra.mrb[0].mxu0 %v1865
    %v2087 = vpop.f32.mrb[0].mxu0
    %v2088 = vadd.f32 %v1576, %v2087
    %v2089 = vpop.f32.mrb[0].mxu0
    %v2090 = vadd.f32 %v1576, %v2089
    %v2091 = vpop.f32.mrb[0].mxu0
    %v2092 = vadd.f32 %v1581, %v2091
    %v2093 = vpop.f32.mrb[0].mxu0
    %v2094 = vadd.f32 %v1581, %v2093
    %2095 = vmatprep.mubr.bf16.mxu0 %v1870
    %2096 = vmatmul.mubr.bf16.gmra.mrb[0].mxu0 %v1869
    %v2097 = vpop.f32.mrb[0].mxu0
    %v2098 = vadd.f32 %v1586, %v2097
    %v2099 = vpop.f32.mrb[0].mxu0
    %v2100 = vadd.f32 %v1586, %v2099
    %v2101 = vpop.f32.mrb[0].mxu0
    %v2102 = vadd.f32 %v1591, %v2101
    %v2103 = vpop.f32.mrb[0].mxu0
    %v2104 = vadd.f32 %v1591, %v2103
    %2105 = vmatprep.mubr.bf16.mxu0 %v1874
    %2106 = vmatmul.mubr.bf16.gmra.mrb[0].mxu0 %v1873
    %v2107 = vpop.f32.mrb[0].mxu0
    %v2108 = vadd.f32 %v1596, %v2107
    %v2109 = vpop.f32.mrb[0].mxu0
    %v2110 = vadd.f32 %v1596, %v2109
    %v2111 = vpop.f32.mrb[0].mxu0
    %v2112 = vadd.f32 %v1601, %v2111
    %v2113 = vpop.f32.mrb[0].mxu0
    %v2114 = vadd.f32 %v1601, %v2113
    %2115 = vmatprep.mubr.bf16.mxu0 %v1878
    %2116 = vmatmul.mubr.bf16.gmra.mrb[0].mxu0 %v1877
    %v2117 = vpop.f32.mrb[0].mxu0
    %v2118 = vadd.f32 %v1606, %v2117
    %v2119 = vpop.f32.mrb[0].mxu0
    %v2120 = vadd.f32 %v1606, %v2119
    %v2121 = vpop.f32.mrb[0].mxu0
    %v2122 = vadd.f32 %v1611, %v2121
    %v2123 = vpop.f32.mrb[0].mxu0
    %v2124 = vadd.f32 %v1611, %v2123
    %2125 = vmatprep.mubr.bf16.mxu0 %v1882
    %2126 = vmatmul.mubr.bf16.gmra.mrb[0].mxu0 %v1881
    %v2127 = vpop.f32.mrb[0].mxu0
    %v2128 = vadd.f32 %v1616, %v2127
    %v2129 = vpop.f32.mrb[0].mxu0
    %v2130 = vadd.f32 %v1616, %v2129
    %v2131 = vpop.f32.mrb[0].mxu0
    %v2132 = vadd.f32 %v1621, %v2131
    %v2133 = vpop.f32.mrb[0].mxu0
    %v2134 = vadd.f32 %v1621, %v2133
    %2135 = vmatprep.mubr.bf16.mxu0 %v1886
    %2136 = vmatmul.mubr.bf16.gmra.mrb[0].mxu0 %v1885
    %v2137 = vpop.f32.mrb[0].mxu0
    %v2138 = vadd.f32 %v1626, %v2137
    %v2139 = vpop.f32.mrb[0].mxu0
    %v2140 = vadd.f32 %v1626, %v2139
    %v2141 = vpop.f32.mrb[0].mxu0
    %v2142 = vadd.f32 %v1631, %v2141
    %v2143 = vpop.f32.mrb[0].mxu0
    %v2144 = vadd.f32 %v1631, %v2143
    %2145 = vdwg.mxu0
    %2146 = vmatprep.subr.bf16.mxu0 %v1346
    %2147 = vmatpush1.bf16.msra.mxu0 %v1345
    %2148 = vmatprep.subr.bf16.mxu0 %v1348
    %2149 = vmatpush1.bf16.msra.mxu0 %v1347
    %2150 = vmatprep.subr.bf16.mxu0 %v1350
    %2151 = vmatpush1.bf16.msra.mxu0 %v1349
    %2152 = vmatprep.subr.bf16.mxu0 %v1352
    %2153 = vmatpush1.bf16.msra.mxu0 %v1351
    %2154 = vmatprep.subr.bf16.mxu0 %v1354
    %2155 = vmatpush1.bf16.msra.mxu0 %v1353
    %2156 = vmatprep.subr.bf16.mxu0 %v1356
    %2157 = vmatpush1.bf16.msra.mxu0 %v1355
    %2158 = vmatprep.subr.bf16.mxu0 %v1358
    %2159 = vmatpush1.bf16.msra.mxu0 %v1357
    %2160 = vmatprep.subr.bf16.mxu0 %v1360
    %2161 = vmatpush1.bf16.msra.mxu0 %v1359
    %2162 = vmatprep.subr.bf16.mxu0 %v1362
    %2163 = vmatpush1.bf16.msra.mxu0 %v1361
    %2164 = vmatprep.subr.bf16.mxu0 %v1364
    %2165 = vmatpush1.bf16.msra.mxu0 %v1363
    %2166 = vmatprep.subr.bf16.mxu0 %v1366
    %2167 = vmatpush1.bf16.msra.mxu0 %v1365
    %2168 = vmatprep.subr.bf16.mxu0 %v1368
    %2169 = vmatpush1.bf16.msra.mxu0 %v1367
    %2170 = vmatprep.subr.bf16.mxu0 %v1370
    %2171 = vmatpush1.bf16.msra.mxu0 %v1369
    %2172 = vmatprep.subr.bf16.mxu0 %v1372
    %2173 = vmatpush1.bf16.msra.mxu0 %v1371
    %2174 = vmatprep.subr.bf16.mxu0 %v1374
    %2175 = vmatpush1.bf16.msra.mxu0 %v1373
    %2176 = vmatprep.subr.bf16.mxu0 %v1376
    %2177 = vmatpush1.bf16.msra.mxu0 %v1375
    %2178 = vmatprep.mubr.bf16.mxu0 %v1828
    %2179 = vmatmul.mubr.bf16.gmra.mrb[0].mxu0 %v1827
    %v2180 = vpop.f32.mrb[0].mxu0
    %v2181 = vadd.f32 %v1988, %v2180
    %v2182 = vpop.f32.mrb[0].mxu0
    %v2183 = vadd.f32 %v1990, %v2182
    %v2184 = vpop.f32.mrb[0].mxu0
    %v2185 = vadd.f32 %v1992, %v2184
    %v2186 = vpop.f32.mrb[0].mxu0
    %v2187 = vadd.f32 %v1994, %v2186
    %2188 = vmatprep.mubr.bf16.mxu0 %v1832
    %2189 = vmatmul.mubr.bf16.gmra.mrb[0].mxu0 %v1831
    %v2190 = vpop.f32.mrb[0].mxu0
    %v2191 = vadd.f32 %v1998, %v2190
    %v2192 = vpop.f32.mrb[0].mxu0
    %v2193 = vadd.f32 %v2000, %v2192
    %v2194 = vpop.f32.mrb[0].mxu0
    %v2195 = vadd.f32 %v2002, %v2194
    %v2196 = vpop.f32.mrb[0].mxu0
    %v2197 = vadd.f32 %v2004, %v2196
    %2198 = vmatprep.mubr.bf16.mxu0 %v1836
    %2199 = vmatmul.mubr.bf16.gmra.mrb[0].mxu0 %v1835
    %v2200 = vpop.f32.mrb[0].mxu0
    %v2201 = vadd.f32 %v2008, %v2200
    %v2202 = vpop.f32.mrb[0].mxu0
    %v2203 = vadd.f32 %v2010, %v2202
    %v2204 = vpop.f32.mrb[0].mxu0
    %v2205 = vadd.f32 %v2012, %v2204
    %v2206 = vpop.f32.mrb[0].mxu0
    %v2207 = vadd.f32 %v2014, %v2206
    %2208 = vmatprep.mubr.bf16.mxu0 %v1840
    %2209 = vmatmul.mubr.bf16.gmra.mrb[0].mxu0 %v1839
    %v2210 = vpop.f32.mrb[0].mxu0
    %v2211 = vadd.f32 %v2018, %v2210
    %v2212 = vpop.f32.mrb[0].mxu0
    %v2213 = vadd.f32 %v2020, %v2212
    %v2214 = vpop.f32.mrb[0].mxu0
    %v2215 = vadd.f32 %v2022, %v2214
    %v2216 = vpop.f32.mrb[0].mxu0
    %v2217 = vadd.f32 %v2024, %v2216
    %2218 = vmatprep.mubr.bf16.mxu0 %v1844
    %2219 = vmatmul.mubr.bf16.gmra.mrb[0].mxu0 %v1843
    %v2220 = vpop.f32.mrb[0].mxu0
    %v2221 = vadd.f32 %v2028, %v2220
    %v2222 = vpop.f32.mrb[0].mxu0
    %v2223 = vadd.f32 %v2030, %v2222
    %v2224 = vpop.f32.mrb[0].mxu0
    %v2225 = vadd.f32 %v2032, %v2224
    %v2226 = vpop.f32.mrb[0].mxu0
    %v2227 = vadd.f32 %v2034, %v2226
    %2228 = vmatprep.mubr.bf16.mxu0 %v1848
    %2229 = vmatmul.mubr.bf16.gmra.mrb[0].mxu0 %v1847
    %v2230 = vpop.f32.mrb[0].mxu0
    %v2231 = vadd.f32 %v2038, %v2230
    %v2232 = vpop.f32.mrb[0].mxu0
    %v2233 = vadd.f32 %v2040, %v2232
    %v2234 = vpop.f32.mrb[0].mxu0
    %v2235 = vadd.f32 %v2042, %v2234
    %v2236 = vpop.f32.mrb[0].mxu0
    %v2237 = vadd.f32 %v2044, %v2236
    %2238 = vmatprep.mubr.bf16.mxu0 %v1852
    %2239 = vmatmul.mubr.bf16.gmra.mrb[0].mxu0 %v1851
    %v2240 = vpop.f32.mrb[0].mxu0
    %v2241 = vadd.f32 %v2048, %v2240
    %v2242 = vpop.f32.mrb[0].mxu0
    %v2243 = vadd.f32 %v2050, %v2242
    %v2244 = vpop.f32.mrb[0].mxu0
    %v2245 = vadd.f32 %v2052, %v2244
    %v2246 = vpop.f32.mrb[0].mxu0
    %v2247 = vadd.f32 %v2054, %v2246
    %2248 = vmatprep.mubr.bf16.mxu0 %v1856
    %2249 = vmatmul.mubr.bf16.gmra.mrb[0].mxu0 %v1855
    %v2250 = vpop.f32.mrb[0].mxu0
    %v2251 = vadd.f32 %v2058, %v2250
    %v2252 = vpop.f32.mrb[0].mxu0
    %v2253 = vadd.f32 %v2060, %v2252
    %v2254 = vpop.f32.mrb[0].mxu0
    %v2255 = vadd.f32 %v2062, %v2254
    %v2256 = vpop.f32.mrb[0].mxu0
    %v2257 = vadd.f32 %v2064, %v2256
    %2258 = vmatprep.mubr.bf16.mxu0 %v1860
    %2259 = vmatmul.mubr.bf16.gmra.mrb[0].mxu0 %v1859
    %v2260 = vpop.f32.mrb[0].mxu0
    %v2261 = vadd.f32 %v2068, %v2260
    %v2262 = vpop.f32.mrb[0].mxu0
    %v2263 = vadd.f32 %v2070, %v2262
    %v2264 = vpop.f32.mrb[0].mxu0
    %v2265 = vadd.f32 %v2072, %v2264
    %v2266 = vpop.f32.mrb[0].mxu0
    %v2267 = vadd.f32 %v2074, %v2266
    %2268 = vmatprep.mubr.bf16.mxu0 %v1864
    %2269 = vmatmul.mubr.bf16.gmra.mrb[0].mxu0 %v1863
    %v2270 = vpop.f32.mrb[0].mxu0
    %v2271 = vadd.f32 %v2078, %v2270
    %v2272 = vpop.f32.mrb[0].mxu0
    %v2273 = vadd.f32 %v2080, %v2272
    %v2274 = vpop.f32.mrb[0].mxu0
    %v2275 = vadd.f32 %v2082, %v2274
    %v2276 = vpop.f32.mrb[0].mxu0
    %v2277 = vadd.f32 %v2084, %v2276
    %2278 = vmatprep.mubr.bf16.mxu0 %v1868
    %2279 = vmatmul.mubr.bf16.gmra.mrb[0].mxu0 %v1867
    %v2280 = vpop.f32.mrb[0].mxu0
    %v2281 = vadd.f32 %v2088, %v2280
    %v2282 = vpop.f32.mrb[0].mxu0
    %v2283 = vadd.f32 %v2090, %v2282
    %v2284 = vpop.f32.mrb[0].mxu0
    %v2285 = vadd.f32 %v2092, %v2284
    %v2286 = vpop.f32.mrb[0].mxu0
    %v2287 = vadd.f32 %v2094, %v2286
    %2288 = vmatprep.mubr.bf16.mxu0 %v1872
    %2289 = vmatmul.mubr.bf16.gmra.mrb[0].mxu0 %v1871
    %v2290 = vpop.f32.mrb[0].mxu0
    %v2291 = vadd.f32 %v2098, %v2290
    %v2292 = vpop.f32.mrb[0].mxu0
    %v2293 = vadd.f32 %v2100, %v2292
    %v2294 = vpop.f32.mrb[0].mxu0
    %v2295 = vadd.f32 %v2102, %v2294
    %v2296 = vpop.f32.mrb[0].mxu0
    %v2297 = vadd.f32 %v2104, %v2296
    %2298 = vmatprep.mubr.bf16.mxu0 %v1876
    %2299 = vmatmul.mubr.bf16.gmra.mrb[0].mxu0 %v1875
    %v2300 = vpop.f32.mrb[0].mxu0
    %v2301 = vadd.f32 %v2108, %v2300
    %v2302 = vpop.f32.mrb[0].mxu0
    %v2303 = vadd.f32 %v2110, %v2302
    %v2304 = vpop.f32.mrb[0].mxu0
    %v2305 = vadd.f32 %v2112, %v2304
    %v2306 = vpop.f32.mrb[0].mxu0
    %v2307 = vadd.f32 %v2114, %v2306
    %2308 = vmatprep.mubr.bf16.mxu0 %v1880
    %2309 = vmatmul.mubr.bf16.gmra.mrb[0].mxu0 %v1879
    %v2310 = vpop.f32.mrb[0].mxu0
    %v2311 = vadd.f32 %v2118, %v2310
    %v2312 = vpop.f32.mrb[0].mxu0
    %v2313 = vadd.f32 %v2120, %v2312
    %v2314 = vpop.f32.mrb[0].mxu0
    %v2315 = vadd.f32 %v2122, %v2314
    %v2316 = vpop.f32.mrb[0].mxu0
    %v2317 = vadd.f32 %v2124, %v2316
    %2318 = vmatprep.mubr.bf16.mxu0 %v1884
    %2319 = vmatmul.mubr.bf16.gmra.mrb[0].mxu0 %v1883
    %v2320 = vpop.f32.mrb[0].mxu0
    %v2321 = vadd.f32 %v2128, %v2320
    %v2322 = vpop.f32.mrb[0].mxu0
    %v2323 = vadd.f32 %v2130, %v2322
    %v2324 = vpop.f32.mrb[0].mxu0
    %v2325 = vadd.f32 %v2132, %v2324
    %v2326 = vpop.f32.mrb[0].mxu0
    %v2327 = vadd.f32 %v2134, %v2326
    %2328 = vmatprep.mubr.bf16.mxu0 %v1888
    %2329 = vmatmul.mubr.bf16.gmra.mrb[0].mxu0 %v1887
    %v2330 = vpop.f32.mrb[0].mxu0
    %v2331 = vadd.f32 %v2138, %v2330
    %v2332 = vpop.f32.mrb[0].mxu0
    %v2333 = vadd.f32 %v2140, %v2332
    %v2334 = vpop.f32.mrb[0].mxu0
    %v2335 = vadd.f32 %v2142, %v2334
    %v2336 = vpop.f32.mrb[0].mxu0
    %v2337 = vadd.f32 %v2144, %v2336
    %2338 = vdwg.mxu0
    %v2339 = vmul.f32 %v2181, 0.2
    %v2340 = vmul.f32 %v2183, 0.2
    %v2341 = vmul.f32 %v2185, 0.2
    %v2342 = vmul.f32 %v2187, 0.2
    %v2343 = vmul.f32 %v2191, 0.2
    %v2344 = vmul.f32 %v2193, 0.2
    %v2345 = vmul.f32 %v2195, 0.2
    %v2346 = vmul.f32 %v2197, 0.2
    %v2347 = vmul.f32 %v2201, 0.2
    %v2348 = vmul.f32 %v2203, 0.2
    %v2349 = vmul.f32 %v2205, 0.2
    %v2350 = vmul.f32 %v2207, 0.2
    %v2351 = vmul.f32 %v2211, 0.2
    %v2352 = vmul.f32 %v2213, 0.2
    %v2353 = vmul.f32 %v2215, 0.2
    %v2354 = vmul.f32 %v2217, 0.2
    %v2355 = vmul.f32 %v2221, 0.2
    %v2356 = vmul.f32 %v2223, 0.2
    %v2357 = vmul.f32 %v2225, 0.2
    %v2358 = vmul.f32 %v2227, 0.2
    %v2359 = vmul.f32 %v2231, 0.2
    %v2360 = vmul.f32 %v2233, 0.2
    %v2361 = vmul.f32 %v2235, 0.2
    %v2362 = vmul.f32 %v2237, 0.2
    %v2363 = vmul.f32 %v2241, 0.2
    %v2364 = vmul.f32 %v2243, 0.2
    %v2365 = vmul.f32 %v2245, 0.2
    %v2366 = vmul.f32 %v2247, 0.2
    %v2367 = vmul.f32 %v2251, 0.2
    %v2368 = vmul.f32 %v2253, 0.2
    %v2369 = vmul.f32 %v2255, 0.2
    %v2370 = vmul.f32 %v2257, 0.2
    %v2371 = vmul.f32 %v2261, 0.2
    %v2372 = vmul.f32 %v2263, 0.2
    %v2373 = vmul.f32 %v2265, 0.2
    %v2374 = vmul.f32 %v2267, 0.2
    %v2375 = vmul.f32 %v2271, 0.2
    %v2376 = vmul.f32 %v2273, 0.2
    %v2377 = vmul.f32 %v2275, 0.2
    %v2378 = vmul.f32 %v2277, 0.2
    %v2379 = vmul.f32 %v2281, 0.2
    %v2380 = vmul.f32 %v2283, 0.2
    %v2381 = vmul.f32 %v2285, 0.2
    %v2382 = vmul.f32 %v2287, 0.2
    %v2383 = vmul.f32 %v2291, 0.2
    %v2384 = vmul.f32 %v2293, 0.2
    %v2385 = vmul.f32 %v2295, 0.2
    %v2386 = vmul.f32 %v2297, 0.2
    %v2387 = vmul.f32 %v2301, 0.2
    %v2388 = vmul.f32 %v2303, 0.2
    %v2389 = vmul.f32 %v2305, 0.2
    %v2390 = vmul.f32 %v2307, 0.2
    %v2391 = vmul.f32 %v2311, 0.2
    %v2392 = vmul.f32 %v2313, 0.2
    %v2393 = vmul.f32 %v2315, 0.2
    %v2394 = vmul.f32 %v2317, 0.2
    %v2395 = vmul.f32 %v2321, 0.2
    %v2396 = vmul.f32 %v2323, 0.2
    %v2397 = vmul.f32 %v2325, 0.2
    %v2398 = vmul.f32 %v2327, 0.2
    %v2399 = vmul.f32 %v2331, 0.2
    %v2400 = vmul.f32 %v2333, 0.2
    %v2401 = vmul.f32 %v2335, 0.2
    %v2402 = vmul.f32 %v2337, 0.2
    %v2403 = vmax.f32 %v2181, %v2339
    %v2404 = vmax.f32 %v2183, %v2340
    %v2405 = vmax.f32 %v2185, %v2341
    %v2406 = vmax.f32 %v2187, %v2342
    %v2407 = vmax.f32 %v2191, %v2343
    %v2408 = vmax.f32 %v2193, %v2344
    %v2409 = vmax.f32 %v2195, %v2345
    %v2410 = vmax.f32 %v2197, %v2346
    %v2411 = vmax.f32 %v2201, %v2347
    %v2412 = vmax.f32 %v2203, %v2348
    %v2413 = vmax.f32 %v2205, %v2349
    %v2414 = vmax.f32 %v2207, %v2350
    %v2415 = vmax.f32 %v2211, %v2351
    %v2416 = vmax.f32 %v2213, %v2352
    %v2417 = vmax.f32 %v2215, %v2353
    %v2418 = vmax.f32 %v2217, %v2354
    %v2419 = vmax.f32 %v2221, %v2355
    %v2420 = vmax.f32 %v2223, %v2356
    %v2421 = vmax.f32 %v2225, %v2357
    %v2422 = vmax.f32 %v2227, %v2358
    %v2423 = vmax.f32 %v2231, %v2359
    %v2424 = vmax.f32 %v2233, %v2360
    %v2425 = vmax.f32 %v2235, %v2361
    %v2426 = vmax.f32 %v2237, %v2362
    %v2427 = vmax.f32 %v2241, %v2363
    %v2428 = vmax.f32 %v2243, %v2364
    %v2429 = vmax.f32 %v2245, %v2365
    %v2430 = vmax.f32 %v2247, %v2366
    %v2431 = vmax.f32 %v2251, %v2367
    %v2432 = vmax.f32 %v2253, %v2368
    %v2433 = vmax.f32 %v2255, %v2369
    %v2434 = vmax.f32 %v2257, %v2370
    %v2435 = vmax.f32 %v2261, %v2371
    %v2436 = vmax.f32 %v2263, %v2372
    %v2437 = vmax.f32 %v2265, %v2373
    %v2438 = vmax.f32 %v2267, %v2374
    %v2439 = vmax.f32 %v2271, %v2375
    %v2440 = vmax.f32 %v2273, %v2376
    %v2441 = vmax.f32 %v2275, %v2377
    %v2442 = vmax.f32 %v2277, %v2378
    %v2443 = vmax.f32 %v2281, %v2379
    %v2444 = vmax.f32 %v2283, %v2380
    %v2445 = vmax.f32 %v2285, %v2381
    %v2446 = vmax.f32 %v2287, %v2382
    %v2447 = vmax.f32 %v2291, %v2383
    %v2448 = vmax.f32 %v2293, %v2384
    %v2449 = vmax.f32 %v2295, %v2385
    %v2450 = vmax.f32 %v2297, %v2386
    %v2451 = vmax.f32 %v2301, %v2387
    %v2452 = vmax.f32 %v2303, %v2388
    %v2453 = vmax.f32 %v2305, %v2389
    %v2454 = vmax.f32 %v2307, %v2390
    %v2455 = vmax.f32 %v2311, %v2391
    %v2456 = vmax.f32 %v2313, %v2392
    %v2457 = vmax.f32 %v2315, %v2393
    %v2458 = vmax.f32 %v2317, %v2394
    %v2459 = vmax.f32 %v2321, %v2395
    %v2460 = vmax.f32 %v2323, %v2396
    %v2461 = vmax.f32 %v2325, %v2397
    %v2462 = vmax.f32 %v2327, %v2398
    %v2463 = vmax.f32 %v2331, %v2399
    %v2464 = vmax.f32 %v2333, %v2400
    %v2465 = vmax.f32 %v2335, %v2401
    %v2466 = vmax.f32 %v2337, %v2402
    %v2467 = vld [vmem:[%s5] sm:$0xff]
    %v2468 = vld [vmem:[%s5 + $0x8] sm:$0xff]
    %v2469 = vld [vmem:[%s5 + $0x10] sm:$0xff]
    %v2470 = vld [vmem:[%s5 + $0x18] sm:$0xff]
    %v2471 = vld [vmem:[%s5 + $0x20] sm:$0xff]
    %v2472 = vld [vmem:[%s5 + $0x28] sm:$0xff]
    %v2473 = vld [vmem:[%s5 + $0x30] sm:$0xff]
    %v2474 = vld [vmem:[%s5 + $0x38] sm:$0xff]
    %v2475 = vld [vmem:[%s5 + $0x40] sm:$0xff]
    %v2476 = vld [vmem:[%s5 + $0x48] sm:$0xff]
    %v2477 = vld [vmem:[%s5 + $0x50] sm:$0xff]
    %v2478 = vld [vmem:[%s5 + $0x58] sm:$0xff]
    %v2479 = vld [vmem:[%s5 + $0x60] sm:$0xff]
    %v2480 = vld [vmem:[%s5 + $0x68] sm:$0xff]
    %v2481 = vld [vmem:[%s5 + $0x70] sm:$0xff]
    %v2482 = vld [vmem:[%s5 + $0x78] sm:$0xff]
    %v2483 = vld [vmem:[%s5 + $0x80] sm:$0xff]
    %v2484 = vld [vmem:[%s5 + $0x88] sm:$0xff]
    %v2485 = vld [vmem:[%s5 + $0x90] sm:$0xff]
    %v2486 = vld [vmem:[%s5 + $0x98] sm:$0xff]
    %v2487 = vld [vmem:[%s5 + $0xa0] sm:$0xff]
    %v2488 = vld [vmem:[%s5 + $0xa8] sm:$0xff]
    %v2489 = vld [vmem:[%s5 + $0xb0] sm:$0xff]
    %v2490 = vld [vmem:[%s5 + $0xb8] sm:$0xff]
    %v2491 = vld [vmem:[%s5 + $0xc0] sm:$0xff]
    %v2492 = vld [vmem:[%s5 + $0xc8] sm:$0xff]
    %v2493 = vld [vmem:[%s5 + $0xd0] sm:$0xff]
    %v2494 = vld [vmem:[%s5 + $0xd8] sm:$0xff]
    %v2495 = vld [vmem:[%s5 + $0xe0] sm:$0xff]
    %v2496 = vld [vmem:[%s5 + $0xe8] sm:$0xff]
    %v2497 = vld [vmem:[%s5 + $0xf0] sm:$0xff]
    %v2498 = vld [vmem:[%s5 + $0xf8] sm:$0xff]
    %2500 = vset.pattern.permute.xlu0 0
    %2501 = vperm.xlu0 %2500, %v2467
    %v2502 = vpop.permute.xlu0 %2501
    %2505 = vset.pattern.permute.xlu0 0
    %2506 = vperm.xlu0 %2505, %v2468
    %v2507 = vpop.permute.xlu0 %2506
    %2510 = vset.pattern.permute.xlu0 0
    %2511 = vperm.xlu0 %2510, %v2469
    %v2512 = vpop.permute.xlu0 %2511
    %2515 = vset.pattern.permute.xlu0 0
    %2516 = vperm.xlu0 %2515, %v2470
    %v2517 = vpop.permute.xlu0 %2516
    %2520 = vset.pattern.permute.xlu0 0
    %2521 = vperm.xlu0 %2520, %v2471
    %v2522 = vpop.permute.xlu0 %2521
    %2525 = vset.pattern.permute.xlu0 0
    %2526 = vperm.xlu0 %2525, %v2472
    %v2527 = vpop.permute.xlu0 %2526
    %2530 = vset.pattern.permute.xlu0 0
    %2531 = vperm.xlu0 %2530, %v2473
    %v2532 = vpop.permute.xlu0 %2531
    %2535 = vset.pattern.permute.xlu0 0
    %2536 = vperm.xlu0 %2535, %v2474
    %v2537 = vpop.permute.xlu0 %2536
    %2540 = vset.pattern.permute.xlu0 0
    %2541 = vperm.xlu0 %2540, %v2475
    %v2542 = vpop.permute.xlu0 %2541
    %2545 = vset.pattern.permute.xlu0 0
    %2546 = vperm.xlu0 %2545, %v2476
    %v2547 = vpop.permute.xlu0 %2546
    %2550 = vset.pattern.permute.xlu0 0
    %2551 = vperm.xlu0 %2550, %v2477
    %v2552 = vpop.permute.xlu0 %2551
    %2555 = vset.pattern.permute.xlu0 0
    %2556 = vperm.xlu0 %2555, %v2478
    %v2557 = vpop.permute.xlu0 %2556
    %2560 = vset.pattern.permute.xlu0 0
    %2561 = vperm.xlu0 %2560, %v2479
    %v2562 = vpop.permute.xlu0 %2561
    %2565 = vset.pattern.permute.xlu0 0
    %2566 = vperm.xlu0 %2565, %v2480
    %v2567 = vpop.permute.xlu0 %2566
    %2570 = vset.pattern.permute.xlu0 0
    %2571 = vperm.xlu0 %2570, %v2481
    %v2572 = vpop.permute.xlu0 %2571
    %2575 = vset.pattern.permute.xlu0 0
    %2576 = vperm.xlu0 %2575, %v2482
    %v2577 = vpop.permute.xlu0 %2576
    %2580 = vset.pattern.permute.xlu0 0
    %2581 = vperm.xlu0 %2580, %v2483
    %v2582 = vpop.permute.xlu0 %2581
    %2585 = vset.pattern.permute.xlu0 0
    %2586 = vperm.xlu0 %2585, %v2484
    %v2587 = vpop.permute.xlu0 %2586
    %2590 = vset.pattern.permute.xlu0 0
    %2591 = vperm.xlu0 %2590, %v2485
    %v2592 = vpop.permute.xlu0 %2591
    %2595 = vset.pattern.permute.xlu0 0
    %2596 = vperm.xlu0 %2595, %v2486
    %v2597 = vpop.permute.xlu0 %2596
    %2600 = vset.pattern.permute.xlu0 0
    %2601 = vperm.xlu0 %2600, %v2487
    %v2602 = vpop.permute.xlu0 %2601
    %2605 = vset.pattern.permute.xlu0 0
    %2606 = vperm.xlu0 %2605, %v2488
    %v2607 = vpop.permute.xlu0 %2606
    %2610 = vset.pattern.permute.xlu0 0
    %2611 = vperm.xlu0 %2610, %v2489
    %v2612 = vpop.permute.xlu0 %2611
    %2615 = vset.pattern.permute.xlu0 0
    %2616 = vperm.xlu0 %2615, %v2490
    %v2617 = vpop.permute.xlu0 %2616
    %2620 = vset.pattern.permute.xlu0 0
    %2621 = vperm.xlu0 %2620, %v2491
    %v2622 = vpop.permute.xlu0 %2621
    %2625 = vset.pattern.permute.xlu0 0
    %2626 = vperm.xlu0 %2625, %v2492
    %v2627 = vpop.permute.xlu0 %2626
    %2630 = vset.pattern.permute.xlu0 0
    %2631 = vperm.xlu0 %2630, %v2493
    %v2632 = vpop.permute.xlu0 %2631
    %2635 = vset.pattern.permute.xlu0 0
    %2636 = vperm.xlu0 %2635, %v2494
    %v2637 = vpop.permute.xlu0 %2636
    %2640 = vset.pattern.permute.xlu0 0
    %2641 = vperm.xlu0 %2640, %v2495
    %v2642 = vpop.permute.xlu0 %2641
    %2645 = vset.pattern.permute.xlu0 0
    %2646 = vperm.xlu0 %2645, %v2496
    %v2647 = vpop.permute.xlu0 %2646
    %2650 = vset.pattern.permute.xlu0 0
    %2651 = vperm.xlu0 %2650, %v2497
    %v2652 = vpop.permute.xlu0 %2651
    %2655 = vset.pattern.permute.xlu0 0
    %2656 = vperm.xlu0 %2655, %v2498
    %v2657 = vpop.permute.xlu0 %2656
    %v2659 = vmul.f32 %v2403, %v2502
    %v2660 = vmul.f32 %v2404, %v2502
    %v2661 = vmul.f32 %v2405, %v2507
    %v2662 = vmul.f32 %v2406, %v2507
    %v2663 = vmul.f32 %v2407, %v2512
    %v2664 = vmul.f32 %v2408, %v2512
    %v2665 = vmul.f32 %v2409, %v2517
    %v2666 = vmul.f32 %v2410, %v2517
    %v2667 = vmul.f32 %v2411, %v2522
    %v2668 = vmul.f32 %v2412, %v2522
    %v2669 = vmul.f32 %v2413, %v2527
    %v2670 = vmul.f32 %v2414, %v2527
    %v2671 = vmul.f32 %v2415, %v2532
    %v2672 = vmul.f32 %v2416, %v2532
    %v2673 = vmul.f32 %v2417, %v2537
    %v2674 = vmul.f32 %v2418, %v2537
    %v2675 = vmul.f32 %v2419, %v2542
    %v2676 = vmul.f32 %v2420, %v2542
    %v2677 = vmul.f32 %v2421, %v2547
    %v2678 = vmul.f32 %v2422, %v2547
    %v2679 = vmul.f32 %v2423, %v2552
    %v2680 = vmul.f32 %v2424, %v2552
    %v2681 = vmul.f32 %v2425, %v2557
    %v2682 = vmul.f32 %v2426, %v2557
    %v2683 = vmul.f32 %v2427, %v2562
    %v2684 = vmul.f32 %v2428, %v2562
    %v2685 = vmul.f32 %v2429, %v2567
    %v2686 = vmul.f32 %v2430, %v2567
    %v2687 = vmul.f32 %v2431, %v2572
    %v2688 = vmul.f32 %v2432, %v2572
    %v2689 = vmul.f32 %v2433, %v2577
    %v2690 = vmul.f32 %v2434, %v2577
    %v2691 = vmul.f32 %v2435, %v2582
    %v2692 = vmul.f32 %v2436, %v2582
    %v2693 = vmul.f32 %v2437, %v2587
    %v2694 = vmul.f32 %v2438, %v2587
    %v2695 = vmul.f32 %v2439, %v2592
    %v2696 = vmul.f32 %v2440, %v2592
    %v2697 = vmul.f32 %v2441, %v2597
    %v2698 = vmul.f32 %v2442, %v2597
    %v2699 = vmul.f32 %v2443, %v2602
    %v2700 = vmul.f32 %v2444, %v2602
    %v2701 = vmul.f32 %v2445, %v2607
    %v2702 = vmul.f32 %v2446, %v2607
    %v2703 = vmul.f32 %v2447, %v2612
    %v2704 = vmul.f32 %v2448, %v2612
    %v2705 = vmul.f32 %v2449, %v2617
    %v2706 = vmul.f32 %v2450, %v2617
    %v2707 = vmul.f32 %v2451, %v2622
    %v2708 = vmul.f32 %v2452, %v2622
    %v2709 = vmul.f32 %v2453, %v2627
    %v2710 = vmul.f32 %v2454, %v2627
    %v2711 = vmul.f32 %v2455, %v2632
    %v2712 = vmul.f32 %v2456, %v2632
    %v2713 = vmul.f32 %v2457, %v2637
    %v2714 = vmul.f32 %v2458, %v2637
    %v2715 = vmul.f32 %v2459, %v2642
    %v2716 = vmul.f32 %v2460, %v2642
    %v2717 = vmul.f32 %v2461, %v2647
    %v2718 = vmul.f32 %v2462, %v2647
    %v2719 = vmul.f32 %v2463, %v2652
    %v2720 = vmul.f32 %v2464, %v2652
    %v2721 = vmul.f32 %v2465, %v2657
    %v2722 = vmul.f32 %v2466, %v2657
    %v2723 = vadd.f32 %v2659, %v2661
    %v2724 = vadd.f32 %v2723, %v2663
    %v2725 = vadd.f32 %v2724, %v2665
    %v2726 = vadd.f32 %v2725, %v2667
    %v2727 = vadd.f32 %v2726, %v2669
    %v2728 = vadd.f32 %v2727, %v2671
    %v2729 = vadd.f32 %v2728, %v2673
    %v2730 = vadd.f32 %v2729, %v2675
    %v2731 = vadd.f32 %v2730, %v2677
    %v2732 = vadd.f32 %v2731, %v2679
    %v2733 = vadd.f32 %v2732, %v2681
    %v2734 = vadd.f32 %v2733, %v2683
    %v2735 = vadd.f32 %v2734, %v2685
    %v2736 = vadd.f32 %v2735, %v2687
    %v2737 = vadd.f32 %v2736, %v2689
    %v2738 = vadd.f32 %v2737, %v2691
    %v2739 = vadd.f32 %v2738, %v2693
    %v2740 = vadd.f32 %v2739, %v2695
    %v2741 = vadd.f32 %v2740, %v2697
    %v2742 = vadd.f32 %v2741, %v2699
    %v2743 = vadd.f32 %v2742, %v2701
    %v2744 = vadd.f32 %v2743, %v2703
    %v2745 = vadd.f32 %v2744, %v2705
    %v2746 = vadd.f32 %v2745, %v2707
    %v2747 = vadd.f32 %v2746, %v2709
    %v2748 = vadd.f32 %v2747, %v2711
    %v2749 = vadd.f32 %v2748, %v2713
    %v2750 = vadd.f32 %v2749, %v2715
    %v2751 = vadd.f32 %v2750, %v2717
    %v2752 = vadd.f32 %v2751, %v2719
    %v2753 = vadd.f32 %v2752, %v2721
    %v2754 = vrot.slane %v2753, 4
    %v2755 = vadd.f32 %v2753, %v2754
    %v2756 = vrot.slane %v2755, 2
    %v2757 = vadd.f32 %v2755, %v2756
    %v2758 = vrot.slane %v2757, 1
    %v2759 = vadd.f32 %v2757, %v2758
    %v2760 = vadd.f32 %v2660, %v2662
    %v2761 = vadd.f32 %v2760, %v2664
    %v2762 = vadd.f32 %v2761, %v2666
    %v2763 = vadd.f32 %v2762, %v2668
    %v2764 = vadd.f32 %v2763, %v2670
    %v2765 = vadd.f32 %v2764, %v2672
    %v2766 = vadd.f32 %v2765, %v2674
    %v2767 = vadd.f32 %v2766, %v2676
    %v2768 = vadd.f32 %v2767, %v2678
    %v2769 = vadd.f32 %v2768, %v2680
    %v2770 = vadd.f32 %v2769, %v2682
    %v2771 = vadd.f32 %v2770, %v2684
    %v2772 = vadd.f32 %v2771, %v2686
    %v2773 = vadd.f32 %v2772, %v2688
    %v2774 = vadd.f32 %v2773, %v2690
    %v2775 = vadd.f32 %v2774, %v2692
    %v2776 = vadd.f32 %v2775, %v2694
    %v2777 = vadd.f32 %v2776, %v2696
    %v2778 = vadd.f32 %v2777, %v2698
    %v2779 = vadd.f32 %v2778, %v2700
    %v2780 = vadd.f32 %v2779, %v2702
    %v2781 = vadd.f32 %v2780, %v2704
    %v2782 = vadd.f32 %v2781, %v2706
    %v2783 = vadd.f32 %v2782, %v2708
    %v2784 = vadd.f32 %v2783, %v2710
    %v2785 = vadd.f32 %v2784, %v2712
    %v2786 = vadd.f32 %v2785, %v2714
    %v2787 = vadd.f32 %v2786, %v2716
    %v2788 = vadd.f32 %v2787, %v2718
    %v2789 = vadd.f32 %v2788, %v2720
    %v2790 = vadd.f32 %v2789, %v2722
    %v2791 = vrot.slane %v2790, 4
    %v2792 = vadd.f32 %v2790, %v2791
    %v2793 = vrot.slane %v2792, 2
    %v2794 = vadd.f32 %v2792, %v2793
    %v2795 = vrot.slane %v2794, 1
    %v2796 = vadd.f32 %v2794, %v2795
    %v2797 = vld [vmem:[#allocation2] sm:$0x1]
    %2799 = vset.pattern.permute.xlu0 0
    %2800 = vperm.xlu0 %2799, %v2797
    %v2801 = vpop.permute.xlu0 %2800
    %v2803 = vlaneseq
    %v2804 = vshrl.u32 %v2803, 7
    %v2805 = vsub.s32 0, %v2804
    %v2806 = vrot.slane %v2801, %v2805
    %v2807 = vadd.f32 %v2759, %v2806
    %v2808 = vadd.f32 %v2796, %v2806
    %v2811 = vcombine.low %v2807, %v2808
    %v2813 = vunpack.c.l.s4 1966171168
    %v2814 = vunpack.c.0.s8 %v2813
    %v2815 = vlaneseq
    %v2816 = vshrl.u32 %v2815, 7
    %v2817 = vsub.s32 %v2814, %v2816
    %v2818 = vrot.slane %v2811, %v2817
    %v2820 = vunpack.c.l.s4 1966171168
    %v2821 = vunpack.c.0.s8 %v2820
    %v2822 = vlaneseq
    %v2823 = vshrl.u32 %v2822, 7
    %v2824 = vsub.s32 %v2821, %v2823
    %v2825 = vrot.slane %v2818, %v2824
    %v2827 = vlaneseq
    %vm2828 = vcmp.ge.s32.totalorder %v2827, 0
    %vm2829 = vcmp.lt.s32.totalorder %v2827, 256
    %vm2830 = vmand %vm2828, %vm2829
    %2831 = vst.msk [vmem:[#allocation3] sm:$0x3] %vm2830, %v2825
    // Predicated region
    $region30: #{latent_d_forward.1} parent=1 // pred_check
      _
    $region31: #{latent_d_forward.1} parent=1 // pred_check_branch
      %2833 = sbr.rel (0) target = $region33
    $region32: #{latent_d_forward.1} parent=1 // pred_region
      %s2835 = ssub.s32 32, 16
      %2836 = vsyncadd [#allocation4], %s2835
      %s2838 = sshll.u32 [#allocation3], 4
      %s2839 = int_to_ptr.vmem [resolvable:$true] %s2838
      %2841 = dma.vmem_to_hbm [thread:$0]  %s2839, 16, %s7, [#allocation4]
    $region33: #{latent_d_forward.1} parent=1 // pred_fallthru
      _
    // Predicated region
    $region34: #{latent_d_forward.1} parent=1 // pred_check
      _
    $region35: #{latent_d_forward.1} parent=1 // pred_check_branch
      %2843 = sbr.rel (0) target = $region37
    $region36: #{latent_d_forward.1} parent=1 // pred_region
      %2844 = dma.done [#allocation4], 32
    $region37: #{latent_d_forward.1} parent=1 // pred_fallthru
      _
    %2845 = vsyncpa [#allocation4], 1

</llo_original>
